<compile_context>
chip_gen: v7x
topology: tpu7x:2x2x1
jax: 0.10.0
libtpu: 0.0.40
codegen_flags: <defaults>
</compile_context>

<pallas_src>
import jax
import jax.numpy as jnp
from jax import lax
from jax.experimental import pallas as pl
from jax.experimental.pallas import tpu as pltpu

BN_EPS = 1e-5
VMEM_LIMIT = 32 * 1024 * 1024  # safe on v5e/v6e/v7x


def _conv1x1(w, bias, inp):
    """1x1 conv as VPU broadcast-MACs.  w: (C_out, C_in), inp: (C_in, TM) -> (C_out, TM)."""
    c_out, c_in = w.shape
    acc = w[:, 0:1] * inp[0:1, :]                 # (C_out,1)*(1,TM) -> (C_out,TM)
    for k in range(1, c_in):                      # unrolled; c_in is tiny here
        acc = acc + w[:, k:k + 1] * inp[k:k + 1, :]
    if bias is not None:
        acc = acc + bias                          # (C_out,1) broadcast over lanes
    return acc


# ---------------- pass 1: per-channel sum / sum-of-squares of g1, x1 ----------------
def _stats_kernel(g_ref, x_ref, wg_ref, bg_ref, wx_ref, bx_ref,
                  sum_g_ref, ssq_g_ref, sum_x_ref, ssq_x_ref):
    @pl.when((pl.program_id(0) == 0) & (pl.program_id(1) == 0))
    def _init():
        sum_g_ref[...] = jnp.zeros_like(sum_g_ref)
        ssq_g_ref[...] = jnp.zeros_like(ssq_g_ref)
        sum_x_ref[...] = jnp.zeros_like(sum_x_ref)
        ssq_x_ref[...] = jnp.zeros_like(ssq_x_ref)

    g1 = _conv1x1(wg_ref[...], bg_ref[...], g_ref[0])     # (F_int, TM)
    x1 = _conv1x1(wx_ref[...], bx_ref[...], x_ref[0])     # (F_int, TM)
    sum_g_ref[...] += jnp.sum(g1, axis=1, keepdims=True)
    ssq_g_ref[...] += jnp.sum(g1 * g1, axis=1, keepdims=True)
    sum_x_ref[...] += jnp.sum(x1, axis=1, keepdims=True)
    ssq_x_ref[...] += jnp.sum(x1 * x1, axis=1, keepdims=True)


# ---------------- pass 2: normalized branches + ReLU + psi projection + psi stats ----
def _psi_kernel(g_ref, x_ref, wg_ref, sg_ref, tg_ref, wx_ref, sx_ref, tx_ref,
                wp_ref, bp_ref, psi_ref, psum_ref, pssq_ref):
    @pl.when((pl.program_id(0) == 0) & (pl.program_id(1) == 0))
    def _init():
        psum_ref[...] = jnp.zeros_like(psum_ref)
        pssq_ref[...] = jnp.zeros_like(pssq_ref)

    g1n = _conv1x1(wg_ref[...], None, g_ref[0]) * sg_ref[...] + tg_ref[...]
    x1n = _conv1x1(wx_ref[...], None, x_ref[0]) * sx_ref[...] + tx_ref[...]
    p = jnp.maximum(g1n + x1n, 0.0)                                   # (F_int, TM)
    psi = jnp.sum(p * wp_ref[...], axis=0, keepdims=True) + bp_ref[...]  # (1, TM)
    psi_ref[0] = psi
    psum_ref[...] += jnp.sum(psi, axis=1, keepdims=True)
    pssq_ref[...] += jnp.sum(psi * psi, axis=1, keepdims=True)


# ---------------- pass 3: out = x * sigmoid(BN(psi_pre)) -----------------------------
def _gate_kernel(x_ref, psi_ref, sp_ref, tp_ref, out_ref):
    z = psi_ref[0] * sp_ref[...] + tp_ref[...]          # (1, TM)
    a = 1.0 / (1.0 + jnp.exp(-z))                       # exp on EUP; exact divide
    out_ref[0] = x_ref[0] * a                           # (F_l, TM) * (1, TM)


def _choose_tile(hw):
    """Largest multiple of 128 that divides hw (capped at 1024); else the full extent."""
    best = None
    t = 128
    while t <= min(hw, 1024):
        if hw % t == 0:
            best = t
        t += 128
    return best if best is not None else hw


def attention_block(g_nchw, x_nchw, params):
    """g: (B, F_g, H, W), x: (B, F_l, H, W) -> (B, F_l, H, W). Training-mode BatchNorm."""
    B, F_g, H, W = g_nchw.shape
    _, F_l, _, _ = x_nchw.shape
    F_int = params["wg"].shape[0]
    HW = H * W
    M = B * HW
    TM = _choose_tile(HW)
    grid = (B, HW // TM)

    g3 = g_nchw.reshape(B, F_g, HW)     # pure reshape, no transpose
    x3 = x_nchw.reshape(B, F_l, HW)

    def blk3(c):
        return pl.BlockSpec((1, c, TM), lambda b, m: (b, 0, m))

    def const2d(shape):
        return pl.BlockSpec(shape, lambda b, m: (0, 0))

    # ---------------- pass 1: stats of g1, x1 ----------------
    sum_g, ssq_g, sum_x, ssq_x = pl.pallas_call(
        _stats_kernel,
        out_shape=(jax.ShapeDtypeStruct((F_int, 1), jnp.float32),
                   jax.ShapeDtypeStruct((F_int, 1), jnp.float32),
                   jax.ShapeDtypeStruct((F_int, 1), jnp.float32),
                   jax.ShapeDtypeStruct((F_int, 1), jnp.float32)),
        grid=grid,
        in_specs=[blk3(F_g), blk3(F_l),
                  const2d((F_int, F_g)), const2d((F_int, 1)),
                  const2d((F_int, F_l)), const2d((F_int, 1))],
        out_specs=(const2d((F_int, 1)), const2d((F_int, 1)),
                   const2d((F_int, 1)), const2d((F_int, 1))),
        compiler_params=pltpu.CompilerParams(
            dimension_semantics=("arbitrary", "arbitrary"),
            vmem_limit_bytes=VMEM_LIMIT),
    )(g3, x3, params["wg"], params["bg"], params["wx"], params["bx"])

    # Fold BN (batch stats, biased variance) + conv bias into a per-channel affine.
    mu_g = sum_g / M
    var_g = ssq_g / M - mu_g * mu_g
    scale_g = params["gamma_g"] * lax.rsqrt(var_g + BN_EPS)
    shift_g = params["beta_g"] + scale_g * (params["bg"] - mu_g)

    mu_x = sum_x / M
    var_x = ssq_x / M - mu_x * mu_x
    scale_x = params["gamma_x"] * lax.rsqrt(var_x + BN_EPS)
    shift_x = params["beta_x"] + scale_x * (params["bx"] - mu_x)

    # ---------------- pass 2: psi pre-activation + its stats ----------------
    psi_pre, psum, pssq = pl.pallas_call(
        _psi_kernel,
        out_shape=(jax.ShapeDtypeStruct((B, 1, HW), jnp.float32),
                   jax.ShapeDtypeStruct((1, 1), jnp.float32),
                   jax.ShapeDtypeStruct((1, 1), jnp.float32)),
        grid=grid,
        in_specs=[blk3(F_g), blk3(F_l),
                  const2d((F_int, F_g)), const2d((F_int, 1)), const2d((F_int, 1)),
                  const2d((F_int, F_l)), const2d((F_int, 1)), const2d((F_int, 1)),
                  const2d((F_int, 1)), const2d((1, 1))],
        out_specs=(pl.BlockSpec((1, 1, TM), lambda b, m: (b, 0, m)),
                   const2d((1, 1)), const2d((1, 1))),
        compiler_params=pltpu.CompilerParams(
            dimension_semantics=("arbitrary", "arbitrary"),
            vmem_limit_bytes=VMEM_LIMIT),
    )(g3, x3, params["wg"], scale_g, shift_g,
      params["wx"], scale_x, shift_x, params["wpsi"], params["bpsi"])

    mu_p = psum / M                                   # (1, 1)
    var_p = pssq / M - mu_p * mu_p
    sp = params["gamma_psi"] * lax.rsqrt(var_p + BN_EPS)
    tp = params["beta_psi"] - sp * mu_p

    # ---------------- pass 3: gate ----------------
    out3 = pl.pallas_call(
        _gate_kernel,
        out_shape=jax.ShapeDtypeStruct((B, F_l, HW), jnp.float32),
        grid=grid,
        in_specs=[blk3(F_l),
                  pl.BlockSpec((1, 1, TM), lambda b, m: (b, 0, m)),
                  const2d((1, 1)), const2d((1, 1))],
        out_specs=pl.BlockSpec((1, F_l, TM), lambda b, m: (b, 0, m)),
        compiler_params=pltpu.CompilerParams(
            dimension_semantics=("parallel", "parallel"),
            vmem_limit_bytes=VMEM_LIMIT),
    )(x3, psi_pre, sp, tp)

    return out3.reshape(B, F_l, H, W)


# ---------------- pure-JAX reference (PyTorch training-mode semantics) ----------------
def reference_forward(g_nchw, x_nchw, params):
    B, F_g, H, W = g_nchw.shape
    _, F_l, _, _ = x_nchw.shape
    HW = H * W
    g = g_nchw.reshape(B, F_g, HW)
    x = x_nchw.reshape(B, F_l, HW)
    hi = lax.Precision.HIGHEST

    def conv(w, b, y):                       # w: (Co, Ci), y: (B, Ci, HW)
        return jnp.einsum("oi,bim->bom", w, y, precision=hi) + b[None]

    def bn(y, gamma, beta):                  # per-channel batch stats, biased var
        mu = jnp.mean(y, axis=(0, 2), keepdims=True)
        var = jnp.mean((y - mu) ** 2, axis=(0, 2), keepdims=True)
        return (y - mu) / jnp.sqrt(var + BN_EPS) * gamma[None] + beta[None]

    g1 = bn(conv(params["wg"], params["bg"], g), params["gamma_g"], params["beta_g"])
    x1 = bn(conv(params["wx"], params["bx"], x), params["gamma_x"], params["beta_x"])
    p = jnp.maximum(g1 + x1, 0.0)
    psi = bn(conv(params["wpsi"].T, params["bpsi"], p),
             params["gamma_psi"], params["beta_psi"])
    psi = jax.nn.sigmoid(psi)
    return (x * psi).reshape(B, F_l, H, W)


def init_params(key, F_g, F_l, F_int):
    """Conv2d(F_in, F_out, 1) weight (F_out, F_in, 1, 1) is stored as (F_out, F_in)."""
    ks = jax.random.split(key, 12)
    return {
        "wg": jax.random.normal(ks[0], (F_int, F_g), jnp.float32) * 0.2,
        "bg": jax.random.normal(ks[1], (F_int, 1), jnp.float32) * 0.1,
        "gamma_g": 1.0 + 0.1 * jax.random.normal(ks[2], (F_int, 1), jnp.float32),
        "beta_g": 0.1 * jax.random.normal(ks[3], (F_int, 1), jnp.float32),
        "wx": jax.random.normal(ks[4], (F_int, F_l), jnp.float32) * 0.2,
        "bx": jax.random.normal(ks[5], (F_int, 1), jnp.float32) * 0.1,
        "gamma_x": 1.0 + 0.1 * jax.random.normal(ks[6], (F_int, 1), jnp.float32),
        "beta_x": 0.1 * jax.random.normal(ks[7], (F_int, 1), jnp.float32),
        "wpsi": jax.random.normal(ks[8], (F_int, 1), jnp.float32) * 0.2,
        "bpsi": jax.random.normal(ks[9], (1, 1), jnp.float32) * 0.1,
        "gamma_psi": 1.0 + 0.1 * jax.random.normal(ks[10], (1, 1), jnp.float32),
        "beta_psi": 0.1 * jax.random.normal(ks[11], (1, 1), jnp.float32),
    }


if __name__ == "__main__":
    # Small shapes consistent with the module: batch=2, F_g=F_l=4, F_int=8, spatial=16.
    B, F_g, F_l, F_int, H, W = 2, 4, 4, 8, 16, 16

    key = jax.random.PRNGKey(0)
    kg, kx, kp = jax.random.split(key, 3)
    g = jax.random.normal(kg, (B, F_g, H, W), jnp.float32)
    x = jax.random.normal(kx, (B, F_l, H, W), jnp.float32)
    params = init_params(kp, F_g, F_l, F_int)

    fwd = jax.jit(attention_block)
    out = jax.block_until_ready(fwd(g, x, params))
    ref = jax.block_until_ready(reference_forward(g, x, params))

    assert out.shape == (B, F_l, H, W)
    err = jnp.max(jnp.abs(out - ref))
    assert jnp.allclose(out, ref, atol=1e-4, rtol=1e-4), f"mismatch vs reference: {err}"

    print("KERNEL_OK")
</pallas_src>

<mosaic_0001>
module attributes {stable_mosaic.version = 11 : i64} {
  func.func @_gate_kernel(%arg0: i32, %arg1: i32, %arg2: memref<1x4x256xf32, #tpu.memory_space<vmem>>, %arg3: memref<1x1x256xf32, #tpu.memory_space<vmem>>, %arg4: memref<1x1xf32, #tpu.memory_space<vmem>>, %arg5: memref<1x1xf32, #tpu.memory_space<vmem>>, %arg6: memref<1x4x256xf32, #tpu.memory_space<vmem>>) attributes {dimension_semantics = [#tpu.dimension_semantics<parallel>, #tpu.dimension_semantics<parallel>], iteration_bounds = array<i64: 2, 1>, scalar_prefetch = 0 : i64, scratch_operands = 0 : i64, tpu.core_type = #tpu.core_type<tc>, window_params = [{transform_indices = @transform_0, window_bounds = array<i64: 1, 4, 256>}, {transform_indices = @transform_1, window_bounds = array<i64: 1, 1, 256>}, {pipeline_mode = #tpu.pipeline_mode<synchronous>, transform_indices = @transform_2, window_bounds = array<i64: 1, 1>}, {pipeline_mode = #tpu.pipeline_mode<synchronous>, transform_indices = @transform_3, window_bounds = array<i64: 1, 1>}, {transform_indices = @transform_4, window_bounds = array<i64: 1, 4, 256>}]} {
    %c0 = arith.constant 0 : index
    %c0_0 = arith.constant 0 : index
    %c0_1 = arith.constant 0 : index
    %0 = vector.load %arg3[%c0, %c0_0, %c0_1] : memref<1x1x256xf32, #tpu.memory_space<vmem>>, vector<1x1x256xf32>
    %1 = vector.shape_cast %0 : vector<1x1x256xf32> to vector<1x256xf32>
    %c0_2 = arith.constant 0 : index
    %c0_3 = arith.constant 0 : index
    %2 = vector.load %arg4[%c0_2, %c0_3] : memref<1x1xf32, #tpu.memory_space<vmem>>, vector<1x1xf32>
    %3 = vector.broadcast %2 : vector<1x1xf32> to vector<1x256xf32>
    %4 = arith.mulf %1, %3 : vector<1x256xf32>
    %c0_4 = arith.constant 0 : index
    %c0_5 = arith.constant 0 : index
    %5 = vector.load %arg5[%c0_4, %c0_5] : memref<1x1xf32, #tpu.memory_space<vmem>>, vector<1x1xf32>
    %6 = vector.broadcast %5 : vector<1x1xf32> to vector<1x256xf32>
    %7 = arith.addf %4, %6 : vector<1x256xf32>
    %cst = arith.constant 0.000000e+00 : f32
    %8 = vector.broadcast %cst : f32 to vector<1x256xf32>
    %9 = arith.subf %8, %7 : vector<1x256xf32>
    %10 = math.exp %9 : vector<1x256xf32>
    %cst_6 = arith.constant 1.000000e+00 : f32
    %11 = vector.broadcast %cst_6 : f32 to vector<1x256xf32>
    %12 = arith.addf %11, %10 : vector<1x256xf32>
    %cst_7 = arith.constant 1.000000e+00 : f32
    %13 = vector.broadcast %cst_7 : f32 to vector<1x256xf32>
    %14 = arith.divf %13, %12 : vector<1x256xf32>
    %c0_8 = arith.constant 0 : index
    %c0_9 = arith.constant 0 : index
    %c0_10 = arith.constant 0 : index
    %15 = vector.load %arg2[%c0_8, %c0_9, %c0_10] : memref<1x4x256xf32, #tpu.memory_space<vmem>>, vector<1x4x256xf32>
    %16 = vector.shape_cast %15 : vector<1x4x256xf32> to vector<4x256xf32>
    %17 = vector.broadcast %14 : vector<1x256xf32> to vector<4x256xf32>
    %18 = arith.mulf %16, %17 : vector<4x256xf32>
    %c0_11 = arith.constant 0 : index
    %c0_12 = arith.constant 0 : index
    %c0_13 = arith.constant 0 : index
    %19 = vector.load %arg6[%c0_11, %c0_12, %c0_13] : memref<1x4x256xf32, #tpu.memory_space<vmem>>, vector<1x4x256xf32>
    %20 = vector.shape_cast %19 : vector<1x4x256xf32> to vector<4x256xf32>
    %21 = vector.shape_cast %18 : vector<4x256xf32> to vector<1x4x256xf32>
    tpu.vector_store %arg6[%c0_11, %c0_12, %c0_13], %21 {strides = array<i32>} : memref<1x4x256xf32, #tpu.memory_space<vmem>>, vector<1x4x256xf32>,
    return
  }
  func.func @transform_0(%arg0: i32, %arg1: i32) -> (i32, i32, i32) {
    %c0_i32 = arith.constant 0 : i32
    %c0_i32_0 = arith.constant 0 : i32
    return %arg0, %c0_i32, %arg1 : i32, i32, i32
  }
  func.func @transform_1(%arg0: i32, %arg1: i32) -> (i32, i32, i32) {
    %c0_i32 = arith.constant 0 : i32
    %c0_i32_0 = arith.constant 0 : i32
    return %arg0, %c0_i32, %arg1 : i32, i32, i32
  }
  func.func @transform_2(%arg0: i32, %arg1: i32) -> (i32, i32) {
    %c0_i32 = arith.constant 0 : i32
    %c0_i32_0 = arith.constant 0 : i32
    %c0_i32_1 = arith.constant 0 : i32
    return %c0_i32, %c0_i32_0 : i32, i32
  }
  func.func @transform_3(%arg0: i32, %arg1: i32) -> (i32, i32) {
    %c0_i32 = arith.constant 0 : i32
    %c0_i32_0 = arith.constant 0 : i32
    %c0_i32_1 = arith.constant 0 : i32
    return %c0_i32, %c0_i32_0 : i32, i32
  }
  func.func @transform_4(%arg0: i32, %arg1: i32) -> (i32, i32, i32) {
    %c0_i32 = arith.constant 0 : i32
    %c0_i32_0 = arith.constant 0 : i32
    return %arg0, %c0_i32, %arg1 : i32, i32, i32
  }
}

module attributes {stable_mosaic.version = 11 : i64} {
  func.func @_stats_kernel(%arg0: i32, %arg1: i32, %arg2: memref<1x4x256xf32, #tpu.memory_space<vmem>>, %arg3: memref<1x4x256xf32, #tpu.memory_space<vmem>>, %arg4: memref<8x4xf32, #tpu.memory_space<vmem>>, %arg5: memref<8x1xf32, #tpu.memory_space<vmem>>, %arg6: memref<8x4xf32, #tpu.memory_space<vmem>>, %arg7: memref<8x1xf32, #tpu.memory_space<vmem>>, %arg8: memref<8x1xf32, #tpu.memory_space<vmem>>, %arg9: memref<8x1xf32, #tpu.memory_space<vmem>>, %arg10: memref<8x1xf32, #tpu.memory_space<vmem>>, %arg11: memref<8x1xf32, #tpu.memory_space<vmem>>) attributes {dimension_semantics = [#tpu.dimension_semantics<arbitrary>, #tpu.dimension_semantics<arbitrary>], iteration_bounds = array<i64: 2, 1>, scalar_prefetch = 0 : i64, scratch_operands = 0 : i64, tpu.core_type = #tpu.core_type<tc>, window_params = [{transform_indices = @transform_0, window_bounds = array<i64: 1, 4, 256>}, {transform_indices = @transform_1, window_bounds = array<i64: 1, 4, 256>}, {pipeline_mode = #tpu.pipeline_mode<synchronous>, transform_indices = @transform_2, window_bounds = array<i64: 8, 4>}, {pipeline_mode = #tpu.pipeline_mode<synchronous>, transform_indices = @transform_3, window_bounds = array<i64: 8, 1>}, {pipeline_mode = #tpu.pipeline_mode<synchronous>, transform_indices = @transform_4, window_bounds = array<i64: 8, 4>}, {pipeline_mode = #tpu.pipeline_mode<synchronous>, transform_indices = @transform_5, window_bounds = array<i64: 8, 1>}, {pipeline_mode = #tpu.pipeline_mode<synchronous>, transform_indices = @transform_6, window_bounds = array<i64: 8, 1>}, {pipeline_mode = #tpu.pipeline_mode<synchronous>, transform_indices = @transform_7, window_bounds = array<i64: 8, 1>}, {pipeline_mode = #tpu.pipeline_mode<synchronous>, transform_indices = @transform_8, window_bounds = array<i64: 8, 1>}, {pipeline_mode = #tpu.pipeline_mode<synchronous>, transform_indices = @transform_9, window_bounds = array<i64: 8, 1>}]} {
    %c0_i32 = arith.constant 0 : i32
    %0 = arith.cmpi eq, %arg0, %c0_i32 : i32
    %c0_i32_0 = arith.constant 0 : i32
    %1 = arith.cmpi eq, %arg1, %c0_i32_0 : i32
    %2 = arith.andi %0, %1 : i1
    %3 = arith.extui %2 : i1 to i32
    %c0_i32_1 = arith.constant 0 : i32
    %4 = arith.cmpi ne, %3, %c0_i32_1 : i32
    scf.if %4 {
      %cst_34 = arith.constant 0.000000e+00 : f32
      %85 = vector.broadcast %cst_34 : f32 to vector<8x1xf32>
      %c0_35 = arith.constant 0 : index
      %c0_36 = arith.constant 0 : index
      %86 = vector.load %arg8[%c0_35, %c0_36] : memref<8x1xf32, #tpu.memory_space<vmem>>, vector<8x1xf32>
      tpu.vector_store %arg8[%c0_35, %c0_36], %85 {strides = array<i32>} : memref<8x1xf32, #tpu.memory_space<vmem>>, vector<8x1xf32>,
      %cst_37 = arith.constant 0.000000e+00 : f32
      %87 = vector.broadcast %cst_37 : f32 to vector<8x1xf32>
      %c0_38 = arith.constant 0 : index
      %c0_39 = arith.constant 0 : index
      %88 = vector.load %arg9[%c0_38, %c0_39] : memref<8x1xf32, #tpu.memory_space<vmem>>, vector<8x1xf32>
      tpu.vector_store %arg9[%c0_38, %c0_39], %87 {strides = array<i32>} : memref<8x1xf32, #tpu.memory_space<vmem>>, vector<8x1xf32>,
      %cst_40 = arith.constant 0.000000e+00 : f32
      %89 = vector.broadcast %cst_40 : f32 to vector<8x1xf32>
      %c0_41 = arith.constant 0 : index
      %c0_42 = arith.constant 0 : index
      %90 = vector.load %arg10[%c0_41, %c0_42] : memref<8x1xf32, #tpu.memory_space<vmem>>, vector<8x1xf32>
      tpu.vector_store %arg10[%c0_41, %c0_42], %89 {strides = array<i32>} : memref<8x1xf32, #tpu.memory_space<vmem>>, vector<8x1xf32>,
      %cst_43 = arith.constant 0.000000e+00 : f32
      %91 = vector.broadcast %cst_43 : f32 to vector<8x1xf32>
      %c0_44 = arith.constant 0 : index
      %c0_45 = arith.constant 0 : index
      %92 = vector.load %arg11[%c0_44, %c0_45] : memref<8x1xf32, #tpu.memory_space<vmem>>, vector<8x1xf32>
      tpu.vector_store %arg11[%c0_44, %c0_45], %91 {strides = array<i32>} : memref<8x1xf32, #tpu.memory_space<vmem>>, vector<8x1xf32>,
    } else {
    }
    %c0 = arith.constant 0 : index
    %c0_2 = arith.constant 0 : index
    %5 = vector.load %arg4[%c0, %c0_2] : memref<8x4xf32, #tpu.memory_space<vmem>>, vector<8x4xf32>
    %c0_3 = arith.constant 0 : index
    %c0_4 = arith.constant 0 : index
    %6 = vector.load %arg5[%c0_3, %c0_4] : memref<8x1xf32, #tpu.memory_space<vmem>>, vector<8x1xf32>
    %c0_5 = arith.constant 0 : index
    %c0_6 = arith.constant 0 : index
    %c0_7 = arith.constant 0 : index
    %7 = vector.load %arg2[%c0_5, %c0_6, %c0_7] : memref<1x4x256xf32, #tpu.memory_space<vmem>>, vector<1x4x256xf32>
    %8 = vector.shape_cast %7 : vector<1x4x256xf32> to vector<4x256xf32>
    %9 = vector.extract_strided_slice %5 {offsets = [0, 0], sizes = [8, 1], strides = [1, 1]} : vector<8x4xf32> to vector<8x1xf32>
    %10 = vector.extract_strided_slice %8 {offsets = [0, 0], sizes = [1, 256], strides = [1, 1]} : vector<4x256xf32> to vector<1x256xf32>
    %11 = vector.broadcast %9 : vector<8x1xf32> to vector<8x256xf32>
    %12 = vector.broadcast %10 : vector<1x256xf32> to vector<8x256xf32>
    %13 = arith.mulf %11, %12 : vector<8x256xf32>
    %14 = vector.extract_strided_slice %5 {offsets = [0, 1], sizes = [8, 1], strides = [1, 1]} : vector<8x4xf32> to vector<8x1xf32>
    %15 = vector.extract_strided_slice %8 {offsets = [1, 0], sizes = [1, 256], strides = [1, 1]} : vector<4x256xf32> to vector<1x256xf32>
    %16 = vector.broadcast %14 : vector<8x1xf32> to vector<8x256xf32>
    %17 = vector.broadcast %15 : vector<1x256xf32> to vector<8x256xf32>
    %18 = arith.mulf %16, %17 : vector<8x256xf32>
    %19 = arith.addf %13, %18 : vector<8x256xf32>
    %20 = vector.extract_strided_slice %5 {offsets = [0, 2], sizes = [8, 1], strides = [1, 1]} : vector<8x4xf32> to vector<8x1xf32>
    %21 = vector.extract_strided_slice %8 {offsets = [2, 0], sizes = [1, 256], strides = [1, 1]} : vector<4x256xf32> to vector<1x256xf32>
    %22 = vector.broadcast %20 : vector<8x1xf32> to vector<8x256xf32>
    %23 = vector.broadcast %21 : vector<1x256xf32> to vector<8x256xf32>
    %24 = arith.mulf %22, %23 : vector<8x256xf32>
    %25 = arith.addf %19, %24 : vector<8x256xf32>
    %26 = vector.extract_strided_slice %5 {offsets = [0, 3], sizes = [8, 1], strides = [1, 1]} : vector<8x4xf32> to vector<8x1xf32>
    %27 = vector.extract_strided_slice %8 {offsets = [3, 0], sizes = [1, 256], strides = [1, 1]} : vector<4x256xf32> to vector<1x256xf32>
    %28 = vector.broadcast %26 : vector<8x1xf32> to vector<8x256xf32>
    %29 = vector.broadcast %27 : vector<1x256xf32> to vector<8x256xf32>
    %30 = arith.mulf %28, %29 : vector<8x256xf32>
    %31 = arith.addf %25, %30 : vector<8x256xf32>
    %32 = vector.broadcast %6 : vector<8x1xf32> to vector<8x256xf32>
    %33 = arith.addf %31, %32 : vector<8x256xf32>
    %c0_8 = arith.constant 0 : index
    %c0_9 = arith.constant 0 : index
    %34 = vector.load %arg6[%c0_8, %c0_9] : memref<8x4xf32, #tpu.memory_space<vmem>>, vector<8x4xf32>
    %c0_10 = arith.constant 0 : index
    %c0_11 = arith.constant 0 : index
    %35 = vector.load %arg7[%c0_10, %c0_11] : memref<8x1xf32, #tpu.memory_space<vmem>>, vector<8x1xf32>
    %c0_12 = arith.constant 0 : index
    %c0_13 = arith.constant 0 : index
    %c0_14 = arith.constant 0 : index
    %36 = vector.load %arg3[%c0_12, %c0_13, %c0_14] : memref<1x4x256xf32, #tpu.memory_space<vmem>>, vector<1x4x256xf32>
    %37 = vector.shape_cast %36 : vector<1x4x256xf32> to vector<4x256xf32>
    %38 = vector.extract_strided_slice %34 {offsets = [0, 0], sizes = [8, 1], strides = [1, 1]} : vector<8x4xf32> to vector<8x1xf32>
    %39 = vector.extract_strided_slice %37 {offsets = [0, 0], sizes = [1, 256], strides = [1, 1]} : vector<4x256xf32> to vector<1x256xf32>
    %40 = vector.broadcast %38 : vector<8x1xf32> to vector<8x256xf32>
    %41 = vector.broadcast %39 : vector<1x256xf32> to vector<8x256xf32>
    %42 = arith.mulf %40, %41 : vector<8x256xf32>
    %43 = vector.extract_strided_slice %34 {offsets = [0, 1], sizes = [8, 1], strides = [1, 1]} : vector<8x4xf32> to vector<8x1xf32>
    %44 = vector.extract_strided_slice %37 {offsets = [1, 0], sizes = [1, 256], strides = [1, 1]} : vector<4x256xf32> to vector<1x256xf32>
    %45 = vector.broadcast %43 : vector<8x1xf32> to vector<8x256xf32>
    %46 = vector.broadcast %44 : vector<1x256xf32> to vector<8x256xf32>
    %47 = arith.mulf %45, %46 : vector<8x256xf32>
    %48 = arith.addf %42, %47 : vector<8x256xf32>
    %49 = vector.extract_strided_slice %34 {offsets = [0, 2], sizes = [8, 1], strides = [1, 1]} : vector<8x4xf32> to vector<8x1xf32>
    %50 = vector.extract_strided_slice %37 {offsets = [2, 0], sizes = [1, 256], strides = [1, 1]} : vector<4x256xf32> to vector<1x256xf32>
    %51 = vector.broadcast %49 : vector<8x1xf32> to vector<8x256xf32>
    %52 = vector.broadcast %50 : vector<1x256xf32> to vector<8x256xf32>
    %53 = arith.mulf %51, %52 : vector<8x256xf32>
    %54 = arith.addf %48, %53 : vector<8x256xf32>
    %55 = vector.extract_strided_slice %34 {offsets = [0, 3], sizes = [8, 1], strides = [1, 1]} : vector<8x4xf32> to vector<8x1xf32>
    %56 = vector.extract_strided_slice %37 {offsets = [3, 0], sizes = [1, 256], strides = [1, 1]} : vector<4x256xf32> to vector<1x256xf32>
    %57 = vector.broadcast %55 : vector<8x1xf32> to vector<8x256xf32>
    %58 = vector.broadcast %56 : vector<1x256xf32> to vector<8x256xf32>
    %59 = arith.mulf %57, %58 : vector<8x256xf32>
    %60 = arith.addf %54, %59 : vector<8x256xf32>
    %61 = vector.broadcast %35 : vector<8x1xf32> to vector<8x256xf32>
    %62 = arith.addf %60, %61 : vector<8x256xf32>
    %c0_15 = arith.constant 0 : index
    %c0_16 = arith.constant 0 : index
    %63 = vector.load %arg8[%c0_15, %c0_16] : memref<8x1xf32, #tpu.memory_space<vmem>>, vector<8x1xf32>
    %cst = arith.constant dense<0.000000e+00> : vector<8xf32>
    %64 = vector.multi_reduction <add>, %33, %cst [1] : vector<8x256xf32> to vector<8xf32>
    %65 = vector.shape_cast %64 : vector<8xf32> to vector<8x1xf32>
    %66 = arith.addf %63, %65 : vector<8x1xf32>
    %c0_17 = arith.constant 0 : index
    %c0_18 = arith.constant 0 : index
    %67 = vector.load %arg8[%c0_17, %c0_18] : memref<8x1xf32, #tpu.memory_space<vmem>>, vector<8x1xf32>
    tpu.vector_store %arg8[%c0_17, %c0_18], %66 {strides = array<i32>} : memref<8x1xf32, #tpu.memory_space<vmem>>, vector<8x1xf32>,
    %c0_19 = arith.constant 0 : index
    %c0_20 = arith.constant 0 : index
    %68 = vector.load %arg9[%c0_19, %c0_20] : memref<8x1xf32, #tpu.memory_space<vmem>>, vector<8x1xf32>
    %69 = arith.mulf %33, %33 : vector<8x256xf32>
    %cst_21 = arith.constant dense<0.000000e+00> : vector<8xf32>
    %70 = vector.multi_reduction <add>, %69, %cst_21 [1] : vector<8x256xf32> to vector<8xf32>
    %71 = vector.shape_cast %70 : vector<8xf32> to vector<8x1xf32>
    %72 = arith.addf %68, %71 : vector<8x1xf32>
    %c0_22 = arith.constant 0 : index
    %c0_23 = arith.constant 0 : index
    %73 = vector.load %arg9[%c0_22, %c0_23] : memref<8x1xf32, #tpu.memory_space<vmem>>, vector<8x1xf32>
    tpu.vector_store %arg9[%c0_22, %c0_23], %72 {strides = array<i32>} : memref<8x1xf32, #tpu.memory_space<vmem>>, vector<8x1xf32>,
    %c0_24 = arith.constant 0 : index
    %c0_25 = arith.constant 0 : index
    %74 = vector.load %arg10[%c0_24, %c0_25] : memref<8x1xf32, #tpu.memory_space<vmem>>, vector<8x1xf32>
    %cst_26 = arith.constant dense<0.000000e+00> : vector<8xf32>
    %75 = vector.multi_reduction <add>, %62, %cst_26 [1] : vector<8x256xf32> to vector<8xf32>
    %76 = vector.shape_cast %75 : vector<8xf32> to vector<8x1xf32>
    %77 = arith.addf %74, %76 : vector<8x1xf32>
    %c0_27 = arith.constant 0 : index
    %c0_28 = arith.constant 0 : index
    %78 = vector.load %arg10[%c0_27, %c0_28] : memref<8x1xf32, #tpu.memory_space<vmem>>, vector<8x1xf32>
    tpu.vector_store %arg10[%c0_27, %c0_28], %77 {strides = array<i32>} : memref<8x1xf32, #tpu.memory_space<vmem>>, vector<8x1xf32>,
    %c0_29 = arith.constant 0 : index
    %c0_30 = arith.constant 0 : index
    %79 = vector.load %arg11[%c0_29, %c0_30] : memref<8x1xf32, #tpu.memory_space<vmem>>, vector<8x1xf32>
    %80 = arith.mulf %62, %62 : vector<8x256xf32>
    %cst_31 = arith.constant dense<0.000000e+00> : vector<8xf32>
    %81 = vector.multi_reduction <add>, %80, %cst_31 [1] : vector<8x256xf32> to vector<8xf32>
    %82 = vector.shape_cast %81 : vector<8xf32> to vector<8x1xf32>
    %83 = arith.addf %79, %82 : vector<8x1xf32>
    %c0_32 = arith.constant 0 : index
    %c0_33 = arith.constant 0 : index
    %84 = vector.load %arg11[%c0_32, %c0_33] : memref<8x1xf32, #tpu.memory_space<vmem>>, vector<8x1xf32>
    tpu.vector_store %arg11[%c0_32, %c0_33], %83 {strides = array<i32>} : memref<8x1xf32, #tpu.memory_space<vmem>>, vector<8x1xf32>,
    return
  }
  func.func @transform_0(%arg0: i32, %arg1: i32) -> (i32, i32, i32) {
    %c0_i32 = arith.constant 0 : i32
    %c0_i32_0 = arith.constant 0 : i32
    return %arg0, %c0_i32, %arg1 : i32, i32, i32
  }
  func.func @transform_1(%arg0: i32, %arg1: i32) -> (i32, i32, i32) {
    %c0_i32 = arith.constant 0 : i32
    %c0_i32_0 = arith.constant 0 : i32
    return %arg0, %c0_i32, %arg1 : i32, i32, i32
  }
  func.func @transform_2(%arg0: i32, %arg1: i32) -> (i32, i32) {
    %c0_i32 = arith.constant 0 : i32
    %c0_i32_0 = arith.constant 0 : i32
    %c0_i32_1 = arith.constant 0 : i32
    return %c0_i32, %c0_i32_0 : i32, i32
  }
  func.func @transform_3(%arg0: i32, %arg1: i32) -> (i32, i32) {
    %c0_i32 = arith.constant 0 : i32
    %c0_i32_0 = arith.constant 0 : i32
    %c0_i32_1 = arith.constant 0 : i32
    return %c0_i32, %c0_i32_0 : i32, i32
  }
  func.func @transform_4(%arg0: i32, %arg1: i32) -> (i32, i32) {
    %c0_i32 = arith.constant 0 : i32
    %c0_i32_0 = arith.constant 0 : i32
    %c0_i32_1 = arith.constant 0 : i32
    return %c0_i32, %c0_i32_0 : i32, i32
  }
  func.func @transform_5(%arg0: i32, %arg1: i32) -> (i32, i32) {
    %c0_i32 = arith.constant 0 : i32
    %c0_i32_0 = arith.constant 0 : i32
    %c0_i32_1 = arith.constant 0 : i32
    return %c0_i32, %c0_i32_0 : i32, i32
  }
  func.func @transform_6(%arg0: i32, %arg1: i32) -> (i32, i32) {
    %c0_i32 = arith.constant 0 : i32
    %c0_i32_0 = arith.constant 0 : i32
    %c0_i32_1 = arith.constant 0 : i32
    return %c0_i32, %c0_i32_0 : i32, i32
  }
  func.func @transform_7(%arg0: i32, %arg1: i32) -> (i32, i32) {
    %c0_i32 = arith.constant 0 : i32
    %c0_i32_0 = arith.constant 0 : i32
    %c0_i32_1 = arith.constant 0 : i32
    return %c0_i32, %c0_i32_0 : i32, i32
  }
  func.func @transform_8(%arg0: i32, %arg1: i32) -> (i32, i32) {
    %c0_i32 = arith.constant 0 : i32
    %c0_i32_0 = arith.constant 0 : i32
    %c0_i32_1 = arith.constant 0 : i32
    return %c0_i32, %c0_i32_0 : i32, i32
  }
  func.func @transform_9(%arg0: i32, %arg1: i32) -> (i32, i32) {
    %c0_i32 = arith.constant 0 : i32
    %c0_i32_0 = arith.constant 0 : i32
    %c0_i32_1 = arith.constant 0 : i32
    return %c0_i32, %c0_i32_0 : i32, i32
  }
}

module attributes {stable_mosaic.version = 11 : i64} {
  func.func @_psi_kernel(%arg0: i32, %arg1: i32, %arg2: memref<1x4x256xf32, #tpu.memory_space<vmem>>, %arg3: memref<1x4x256xf32, #tpu.memory_space<vmem>>, %arg4: memref<8x4xf32, #tpu.memory_space<vmem>>, %arg5: memref<8x1xf32, #tpu.memory_space<vmem>>, %arg6: memref<8x1xf32, #tpu.memory_space<vmem>>, %arg7: memref<8x4xf32, #tpu.memory_space<vmem>>, %arg8: memref<8x1xf32, #tpu.memory_space<vmem>>, %arg9: memref<8x1xf32, #tpu.memory_space<vmem>>, %arg10: memref<8x1xf32, #tpu.memory_space<vmem>>, %arg11: memref<1x1xf32, #tpu.memory_space<vmem>>, %arg12: memref<1x1x256xf32, #tpu.memory_space<vmem>>, %arg13: memref<1x1xf32, #tpu.memory_space<vmem>>, %arg14: memref<1x1xf32, #tpu.memory_space<vmem>>) attributes {dimension_semantics = [#tpu.dimension_semantics<arbitrary>, #tpu.dimension_semantics<arbitrary>], iteration_bounds = array<i64: 2, 1>, scalar_prefetch = 0 : i64, scratch_operands = 0 : i64, tpu.core_type = #tpu.core_type<tc>, window_params = [{transform_indices = @transform_0, window_bounds = array<i64: 1, 4, 256>}, {transform_indices = @transform_1, window_bounds = array<i64: 1, 4, 256>}, {pipeline_mode = #tpu.pipeline_mode<synchronous>, transform_indices = @transform_2, window_bounds = array<i64: 8, 4>}, {pipeline_mode = #tpu.pipeline_mode<synchronous>, transform_indices = @transform_3, window_bounds = array<i64: 8, 1>}, {pipeline_mode = #tpu.pipeline_mode<synchronous>, transform_indices = @transform_4, window_bounds = array<i64: 8, 1>}, {pipeline_mode = #tpu.pipeline_mode<synchronous>, transform_indices = @transform_5, window_bounds = array<i64: 8, 4>}, {pipeline_mode = #tpu.pipeline_mode<synchronous>, transform_indices = @transform_6, window_bounds = array<i64: 8, 1>}, {pipeline_mode = #tpu.pipeline_mode<synchronous>, transform_indices = @transform_7, window_bounds = array<i64: 8, 1>}, {pipeline_mode = #tpu.pipeline_mode<synchronous>, transform_indices = @transform_8, window_bounds = array<i64: 8, 1>}, {pipeline_mode = #tpu.pipeline_mode<synchronous>, transform_indices = @transform_9, window_bounds = array<i64: 1, 1>}, {transform_indices = @transform_10, window_bounds = array<i64: 1, 1, 256>}, {pipeline_mode = #tpu.pipeline_mode<synchronous>, transform_indices = @transform_11, window_bounds = array<i64: 1, 1>}, {pipeline_mode = #tpu.pipeline_mode<synchronous>, transform_indices = @transform_12, window_bounds = array<i64: 1, 1>}]} {
    %c0_i32 = arith.constant 0 : i32
    %0 = arith.cmpi eq, %arg0, %c0_i32 : i32
    %c0_i32_0 = arith.constant 0 : i32
    %1 = arith.cmpi eq, %arg1, %c0_i32_0 : i32
    %2 = arith.andi %0, %1 : i1
    %3 = arith.extui %2 : i1 to i32
    %c0_i32_1 = arith.constant 0 : i32
    %4 = arith.cmpi ne, %3, %c0_i32_1 : i32
    scf.if %4 {
      %cst_37 = arith.constant 0.000000e+00 : f32
      %94 = vector.broadcast %cst_37 : f32 to vector<1x1xf32>
      %c0_38 = arith.constant 0 : index
      %c0_39 = arith.constant 0 : index
      %95 = vector.load %arg13[%c0_38, %c0_39] : memref<1x1xf32, #tpu.memory_space<vmem>>, vector<1x1xf32>
      tpu.vector_store %arg13[%c0_38, %c0_39], %94 {strides = array<i32>} : memref<1x1xf32, #tpu.memory_space<vmem>>, vector<1x1xf32>,
      %cst_40 = arith.constant 0.000000e+00 : f32
      %96 = vector.broadcast %cst_40 : f32 to vector<1x1xf32>
      %c0_41 = arith.constant 0 : index
      %c0_42 = arith.constant 0 : index
      %97 = vector.load %arg14[%c0_41, %c0_42] : memref<1x1xf32, #tpu.memory_space<vmem>>, vector<1x1xf32>
      tpu.vector_store %arg14[%c0_41, %c0_42], %96 {strides = array<i32>} : memref<1x1xf32, #tpu.memory_space<vmem>>, vector<1x1xf32>,
    } else {
    }
    %c0 = arith.constant 0 : index
    %c0_2 = arith.constant 0 : index
    %5 = vector.load %arg4[%c0, %c0_2] : memref<8x4xf32, #tpu.memory_space<vmem>>, vector<8x4xf32>
    %c0_3 = arith.constant 0 : index
    %c0_4 = arith.constant 0 : index
    %c0_5 = arith.constant 0 : index
    %6 = vector.load %arg2[%c0_3, %c0_4, %c0_5] : memref<1x4x256xf32, #tpu.memory_space<vmem>>, vector<1x4x256xf32>
    %7 = vector.shape_cast %6 : vector<1x4x256xf32> to vector<4x256xf32>
    %8 = vector.extract_strided_slice %5 {offsets = [0, 0], sizes = [8, 1], strides = [1, 1]} : vector<8x4xf32> to vector<8x1xf32>
    %9 = vector.extract_strided_slice %7 {offsets = [0, 0], sizes = [1, 256], strides = [1, 1]} : vector<4x256xf32> to vector<1x256xf32>
    %10 = vector.broadcast %8 : vector<8x1xf32> to vector<8x256xf32>
    %11 = vector.broadcast %9 : vector<1x256xf32> to vector<8x256xf32>
    %12 = arith.mulf %10, %11 : vector<8x256xf32>
    %13 = vector.extract_strided_slice %5 {offsets = [0, 1], sizes = [8, 1], strides = [1, 1]} : vector<8x4xf32> to vector<8x1xf32>
    %14 = vector.extract_strided_slice %7 {offsets = [1, 0], sizes = [1, 256], strides = [1, 1]} : vector<4x256xf32> to vector<1x256xf32>
    %15 = vector.broadcast %13 : vector<8x1xf32> to vector<8x256xf32>
    %16 = vector.broadcast %14 : vector<1x256xf32> to vector<8x256xf32>
    %17 = arith.mulf %15, %16 : vector<8x256xf32>
    %18 = arith.addf %12, %17 : vector<8x256xf32>
    %19 = vector.extract_strided_slice %5 {offsets = [0, 2], sizes = [8, 1], strides = [1, 1]} : vector<8x4xf32> to vector<8x1xf32>
    %20 = vector.extract_strided_slice %7 {offsets = [2, 0], sizes = [1, 256], strides = [1, 1]} : vector<4x256xf32> to vector<1x256xf32>
    %21 = vector.broadcast %19 : vector<8x1xf32> to vector<8x256xf32>
    %22 = vector.broadcast %20 : vector<1x256xf32> to vector<8x256xf32>
    %23 = arith.mulf %21, %22 : vector<8x256xf32>
    %24 = arith.addf %18, %23 : vector<8x256xf32>
    %25 = vector.extract_strided_slice %5 {offsets = [0, 3], sizes = [8, 1], strides = [1, 1]} : vector<8x4xf32> to vector<8x1xf32>
    %26 = vector.extract_strided_slice %7 {offsets = [3, 0], sizes = [1, 256], strides = [1, 1]} : vector<4x256xf32> to vector<1x256xf32>
    %27 = vector.broadcast %25 : vector<8x1xf32> to vector<8x256xf32>
    %28 = vector.broadcast %26 : vector<1x256xf32> to vector<8x256xf32>
    %29 = arith.mulf %27, %28 : vector<8x256xf32>
    %30 = arith.addf %24, %29 : vector<8x256xf32>
    %c0_6 = arith.constant 0 : index
    %c0_7 = arith.constant 0 : index
    %31 = vector.load %arg5[%c0_6, %c0_7] : memref<8x1xf32, #tpu.memory_space<vmem>>, vector<8x1xf32>
    %32 = vector.broadcast %31 : vector<8x1xf32> to vector<8x256xf32>
    %33 = arith.mulf %30, %32 : vector<8x256xf32>
    %c0_8 = arith.constant 0 : index
    %c0_9 = arith.constant 0 : index
    %34 = vector.load %arg6[%c0_8, %c0_9] : memref<8x1xf32, #tpu.memory_space<vmem>>, vector<8x1xf32>
    %35 = vector.broadcast %34 : vector<8x1xf32> to vector<8x256xf32>
    %36 = arith.addf %33, %35 : vector<8x256xf32>
    %c0_10 = arith.constant 0 : index
    %c0_11 = arith.constant 0 : index
    %37 = vector.load %arg7[%c0_10, %c0_11] : memref<8x4xf32, #tpu.memory_space<vmem>>, vector<8x4xf32>
    %c0_12 = arith.constant 0 : index
    %c0_13 = arith.constant 0 : index
    %c0_14 = arith.constant 0 : index
    %38 = vector.load %arg3[%c0_12, %c0_13, %c0_14] : memref<1x4x256xf32, #tpu.memory_space<vmem>>, vector<1x4x256xf32>
    %39 = vector.shape_cast %38 : vector<1x4x256xf32> to vector<4x256xf32>
    %40 = vector.extract_strided_slice %37 {offsets = [0, 0], sizes = [8, 1], strides = [1, 1]} : vector<8x4xf32> to vector<8x1xf32>
    %41 = vector.extract_strided_slice %39 {offsets = [0, 0], sizes = [1, 256], strides = [1, 1]} : vector<4x256xf32> to vector<1x256xf32>
    %42 = vector.broadcast %40 : vector<8x1xf32> to vector<8x256xf32>
    %43 = vector.broadcast %41 : vector<1x256xf32> to vector<8x256xf32>
    %44 = arith.mulf %42, %43 : vector<8x256xf32>
    %45 = vector.extract_strided_slice %37 {offsets = [0, 1], sizes = [8, 1], strides = [1, 1]} : vector<8x4xf32> to vector<8x1xf32>
    %46 = vector.extract_strided_slice %39 {offsets = [1, 0], sizes = [1, 256], strides = [1, 1]} : vector<4x256xf32> to vector<1x256xf32>
    %47 = vector.broadcast %45 : vector<8x1xf32> to vector<8x256xf32>
    %48 = vector.broadcast %46 : vector<1x256xf32> to vector<8x256xf32>
    %49 = arith.mulf %47, %48 : vector<8x256xf32>
    %50 = arith.addf %44, %49 : vector<8x256xf32>
    %51 = vector.extract_strided_slice %37 {offsets = [0, 2], sizes = [8, 1], strides = [1, 1]} : vector<8x4xf32> to vector<8x1xf32>
    %52 = vector.extract_strided_slice %39 {offsets = [2, 0], sizes = [1, 256], strides = [1, 1]} : vector<4x256xf32> to vector<1x256xf32>
    %53 = vector.broadcast %51 : vector<8x1xf32> to vector<8x256xf32>
    %54 = vector.broadcast %52 : vector<1x256xf32> to vector<8x256xf32>
    %55 = arith.mulf %53, %54 : vector<8x256xf32>
    %56 = arith.addf %50, %55 : vector<8x256xf32>
    %57 = vector.extract_strided_slice %37 {offsets = [0, 3], sizes = [8, 1], strides = [1, 1]} : vector<8x4xf32> to vector<8x1xf32>
    %58 = vector.extract_strided_slice %39 {offsets = [3, 0], sizes = [1, 256], strides = [1, 1]} : vector<4x256xf32> to vector<1x256xf32>
    %59 = vector.broadcast %57 : vector<8x1xf32> to vector<8x256xf32>
    %60 = vector.broadcast %58 : vector<1x256xf32> to vector<8x256xf32>
    %61 = arith.mulf %59, %60 : vector<8x256xf32>
    %62 = arith.addf %56, %61 : vector<8x256xf32>
    %c0_15 = arith.constant 0 : index
    %c0_16 = arith.constant 0 : index
    %63 = vector.load %arg8[%c0_15, %c0_16] : memref<8x1xf32, #tpu.memory_space<vmem>>, vector<8x1xf32>
    %64 = vector.broadcast %63 : vector<8x1xf32> to vector<8x256xf32>
    %65 = arith.mulf %62, %64 : vector<8x256xf32>
    %c0_17 = arith.constant 0 : index
    %c0_18 = arith.constant 0 : index
    %66 = vector.load %arg9[%c0_17, %c0_18] : memref<8x1xf32, #tpu.memory_space<vmem>>, vector<8x1xf32>
    %67 = vector.broadcast %66 : vector<8x1xf32> to vector<8x256xf32>
    %68 = arith.addf %65, %67 : vector<8x256xf32>
    %69 = arith.addf %36, %68 : vector<8x256xf32>
    %cst = arith.constant 0.000000e+00 : f32
    %70 = vector.broadcast %cst : f32 to vector<8x256xf32>
    %71 = arith.maximumf %69, %70 : vector<8x256xf32>
    %c0_19 = arith.constant 0 : index
    %c0_20 = arith.constant 0 : index
    %72 = vector.load %arg10[%c0_19, %c0_20] : memref<8x1xf32, #tpu.memory_space<vmem>>, vector<8x1xf32>
    %73 = vector.broadcast %72 : vector<8x1xf32> to vector<8x256xf32>
    %74 = arith.mulf %71, %73 : vector<8x256xf32>
    %cst_21 = arith.constant dense<0.000000e+00> : vector<256xf32>
    %75 = vector.multi_reduction <add>, %74, %cst_21 [0] : vector<8x256xf32> to vector<256xf32>
    %76 = vector.shape_cast %75 : vector<256xf32> to vector<1x256xf32>
    %c0_22 = arith.constant 0 : index
    %c0_23 = arith.constant 0 : index
    %77 = vector.load %arg11[%c0_22, %c0_23] : memref<1x1xf32, #tpu.memory_space<vmem>>, vector<1x1xf32>
    %78 = vector.broadcast %77 : vector<1x1xf32> to vector<1x256xf32>
    %79 = arith.addf %76, %78 : vector<1x256xf32>
    %c0_24 = arith.constant 0 : index
    %c0_25 = arith.constant 0 : index
    %c0_26 = arith.constant 0 : index
    %80 = vector.load %arg12[%c0_24, %c0_25, %c0_26] : memref<1x1x256xf32, #tpu.memory_space<vmem>>, vector<1x1x256xf32>
    %81 = vector.shape_cast %80 : vector<1x1x256xf32> to vector<1x256xf32>
    %82 = vector.shape_cast %79 : vector<1x256xf32> to vector<1x1x256xf32>
    tpu.vector_store %arg12[%c0_24, %c0_25, %c0_26], %82 {strides = array<i32>} : memref<1x1x256xf32, #tpu.memory_space<vmem>>, vector<1x1x256xf32>,
    %c0_27 = arith.constant 0 : index
    %c0_28 = arith.constant 0 : index
    %83 = vector.load %arg13[%c0_27, %c0_28] : memref<1x1xf32, #tpu.memory_space<vmem>>, vector<1x1xf32>
    %cst_29 = arith.constant dense<0.000000e+00> : vector<1xf32>
    %84 = vector.multi_reduction <add>, %79, %cst_29 [1] : vector<1x256xf32> to vector<1xf32>
    %85 = vector.shape_cast %84 : vector<1xf32> to vector<1x1xf32>
    %86 = arith.addf %83, %85 : vector<1x1xf32>
    %c0_30 = arith.constant 0 : index
    %c0_31 = arith.constant 0 : index
    %87 = vector.load %arg13[%c0_30, %c0_31] : memref<1x1xf32, #tpu.memory_space<vmem>>, vector<1x1xf32>
    tpu.vector_store %arg13[%c0_30, %c0_31], %86 {strides = array<i32>} : memref<1x1xf32, #tpu.memory_space<vmem>>, vector<1x1xf32>,
    %c0_32 = arith.constant 0 : index
    %c0_33 = arith.constant 0 : index
    %88 = vector.load %arg14[%c0_32, %c0_33] : memref<1x1xf32, #tpu.memory_space<vmem>>, vector<1x1xf32>
    %89 = arith.mulf %79, %79 : vector<1x256xf32>
    %cst_34 = arith.constant dense<0.000000e+00> : vector<1xf32>
    %90 = vector.multi_reduction <add>, %89, %cst_34 [1] : vector<1x256xf32> to vector<1xf32>
    %91 = vector.shape_cast %90 : vector<1xf32> to vector<1x1xf32>
    %92 = arith.addf %88, %91 : vector<1x1xf32>
    %c0_35 = arith.constant 0 : index
    %c0_36 = arith.constant 0 : index
    %93 = vector.load %arg14[%c0_35, %c0_36] : memref<1x1xf32, #tpu.memory_space<vmem>>, vector<1x1xf32>
    tpu.vector_store %arg14[%c0_35, %c0_36], %92 {strides = array<i32>} : memref<1x1xf32, #tpu.memory_space<vmem>>, vector<1x1xf32>,
    return
  }
  func.func @transform_0(%arg0: i32, %arg1: i32) -> (i32, i32, i32) {
    %c0_i32 = arith.constant 0 : i32
    %c0_i32_0 = arith.constant 0 : i32
    return %arg0, %c0_i32, %arg1 : i32, i32, i32
  }
  func.func @transform_1(%arg0: i32, %arg1: i32) -> (i32, i32, i32) {
    %c0_i32 = arith.constant 0 : i32
    %c0_i32_0 = arith.constant 0 : i32
    return %arg0, %c0_i32, %arg1 : i32, i32, i32
  }
  func.func @transform_2(%arg0: i32, %arg1: i32) -> (i32, i32) {
    %c0_i32 = arith.constant 0 : i32
    %c0_i32_0 = arith.constant 0 : i32
    %c0_i32_1 = arith.constant 0 : i32
    return %c0_i32, %c0_i32_0 : i32, i32
  }
  func.func @transform_3(%arg0: i32, %arg1: i32) -> (i32, i32) {
    %c0_i32 = arith.constant 0 : i32
    %c0_i32_0 = arith.constant 0 : i32
    %c0_i32_1 = arith.constant 0 : i32
    return %c0_i32, %c0_i32_0 : i32, i32
  }
  func.func @transform_4(%arg0: i32, %arg1: i32) -> (i32, i32) {
    %c0_i32 = arith.constant 0 : i32
    %c0_i32_0 = arith.constant 0 : i32
    %c0_i32_1 = arith.constant 0 : i32
    return %c0_i32, %c0_i32_0 : i32, i32
  }
  func.func @transform_5(%arg0: i32, %arg1: i32) -> (i32, i32) {
    %c0_i32 = arith.constant 0 : i32
    %c0_i32_0 = arith.constant 0 : i32
    %c0_i32_1 = arith.constant 0 : i32
    return %c0_i32, %c0_i32_0 : i32, i32
  }
  func.func @transform_6(%arg0: i32, %arg1: i32) -> (i32, i32) {
    %c0_i32 = arith.constant 0 : i32
    %c0_i32_0 = arith.constant 0 : i32
    %c0_i32_1 = arith.constant 0 : i32
    return %c0_i32, %c0_i32_0 : i32, i32
  }
  func.func @transform_7(%arg0: i32, %arg1: i32) -> (i32, i32) {
    %c0_i32 = arith.constant 0 : i32
    %c0_i32_0 = arith.constant 0 : i32
    %c0_i32_1 = arith.constant 0 : i32
    return %c0_i32, %c0_i32_0 : i32, i32
  }
  func.func @transform_8(%arg0: i32, %arg1: i32) -> (i32, i32) {
    %c0_i32 = arith.constant 0 : i32
    %c0_i32_0 = arith.constant 0 : i32
    %c0_i32_1 = arith.constant 0 : i32
    return %c0_i32, %c0_i32_0 : i32, i32
  }
  func.func @transform_9(%arg0: i32, %arg1: i32) -> (i32, i32) {
    %c0_i32 = arith.constant 0 : i32
    %c0_i32_0 = arith.constant 0 : i32
    %c0_i32_1 = arith.constant 0 : i32
    return %c0_i32, %c0_i32_0 : i32, i32
  }
  func.func @transform_10(%arg0: i32, %arg1: i32) -> (i32, i32, i32) {
    %c0_i32 = arith.constant 0 : i32
    %c0_i32_0 = arith.constant 0 : i32
    return %arg0, %c0_i32, %arg1 : i32, i32, i32
  }
  func.func @transform_11(%arg0: i32, %arg1: i32) -> (i32, i32) {
    %c0_i32 = arith.constant 0 : i32
    %c0_i32_0 = arith.constant 0 : i32
    %c0_i32_1 = arith.constant 0 : i32
    return %c0_i32, %c0_i32_0 : i32, i32
  }
  func.func @transform_12(%arg0: i32, %arg1: i32) -> (i32, i32) {
    %c0_i32 = arith.constant 0 : i32
    %c0_i32_0 = arith.constant 0 : i32
    %c0_i32_1 = arith.constant 0 : i32
    return %c0_i32, %c0_i32_0 : i32, i32
  }
}

</mosaic_0001>

<llo_original>
// kernel: attention_block.5
$region0: #{attention_block.5}
  #allocation0 [shape = 'u32[]', space=smem, size = 0x4, offset = 0x4, fixed_abs, tag = 'smem constant byte address 0x4 - core index']
  #allocation1 [shape = 'u32[144,128]{1,0:T(1,128)}', space=vmem, size = 0x12000, scoped, tag = 'internal scratch']
  #allocation2 [shape = 'f32[1,1]{1,0:T(1,128)S(1)}', space=vmem, size = 0x200, scoped, tag = 'scoped memory for attention_block.5']
  #allocation3 [shape = 'f32[1,1]{1,0:T(1,128)S(1)}', space=vmem, size = 0x200, scoped, tag = 'scoped memory for attention_block.5']
  %s0 = inlined_call_operand.vmem [shape: f32[2,4,256], index: 0, kind: input, shape index: {}]
  %s1 = inlined_call_operand.vmem [shape: f32[2,1,256], index: 1, kind: input, shape index: {}]
  %s2 = inlined_call_operand.<no memory space> [shape: f32[1,1], index: 2, kind: input, shape index: {}]
  %s3 = inlined_call_operand.<no memory space> [shape: f32[1,1], index: 3, kind: input, shape index: {}]
  %s4 = inlined_call_operand.vmem [shape: f32[2,4,256], index: 4, kind: output, shape index: {}]
  %s5 = sld [smem:[#allocation0]]
  $region49: #{attention_block.5} parent=0
    _
  %s7 = ssub.s32 1, %s5
  %s8 = scalar_select 0, %s7, %s5
  %v9 = vstv %s2
  %10 = vst [vmem:[#allocation2] sm:$0x1] %v9
  %v11 = vstv %s3
  %12 = vst [vmem:[#allocation3] sm:$0x1] %v11
  loop: start=0, step=1, limit=4
  $region2: #{attention_block.5} parent=0 // loop_pre_header
    _
  $region3: #{attention_block.5} parent=0 // loop_header
    %s14 = sphi 0, %s18
    %p15 = scmp.ge.s32.totalorder %s14, 4
    %s21 = sphi 0, %s33
    %s22 = sphi 0, %s29
    %s23 = sphi 0, %s21
    %s24 = sphi 0, %s22
    %s25 = sphi 0, %s23
    %s26 = sphi 0, %s24
    %s38 = sphi 0, %s40
    %s41 = sphi 0, %s38
    %s42 = sphi 0, %s41
    %s58 = sphi 0, %s42
    %s66 = sphi 0, %s68
    %s69 = sphi 0, %s66
    %s70 = sphi 0, %s69
    %s86 = sphi 0, %s70
    %s90 = sphi 0, %s90
    %s92 = sphi 0, %s90
    %s93 = sphi 0, %s92
    %s107 = sphi 0, %s93
    %s111 = sphi 0, %s111
    %s113 = sphi 0, %s111
    %s114 = sphi 0, %s113
    %s128 = sphi 0, %s114
    %s136 = sphi 0, %s138
    %s139 = sphi 0, %s136
    %s140 = sphi 0, %s139
    %s156 = sphi 0, %s140
  $region4: #{attention_block.5} parent=0 // loop_header_branch
    %17 = sbr.rel (%p15) target = $region8
  $region5: #{attention_block.5} parent=0 // loop_body
    %s19 = ssub.s32 %s14, 1
    %s20 = ssub.s32 %s14, 2
    %s27 = sadd.s32 1, %s22
    %p28 = scmp.ge.s32.totalorder %s27, 1
    %s29 = scalar_select %p28, 0, %s27
    %s30 = sadd.s32 1, %s21
    %s31 = scalar_select %p28, %s30, %s21
    %p32 = scmp.ge.s32.totalorder %s31, 2
    %s33 = scalar_select %p32, 0, %s31
    %s34 = ssub.s32 %s21, %s33
    %s35 = ssub.s32 %s22, %s29
    %s36 = sor.u32 %s34, %s35
    %p37 = scmp.eq.s32.totalorder %s36, 0
    %s39 = sadd.s32 %s38, 1
    %s40 = scalar_select %p37, %s38, %s39
    %p43 = pneg %p37
    %p44 = scmp.eq.s32.totalorder %s14, 1
    %p45 = por %p43, %p44
    %p46 = scmp.ne.s32.totalorder %s38, %s41
    %p47 = scmp.eq.s32.totalorder %s14, 0
    %p48 = por %p46, %p47
    %p49 = scmp.ne.s32.totalorder %s38, %s41
    %p50 = scmp.eq.s32.totalorder %s19, 1
    %p51 = por %p49, %p50
    %p52 = scmp.ne.s32.totalorder %s41, %s42
    %p53 = scmp.eq.s32.totalorder %s19, 0
    %p54 = por %p52, %p53
    %p55 = scmp.ne.s32.totalorder %s41, %s42
    %p56 = scmp.eq.s32.totalorder %s20, 1
    %p57 = por %p55, %p56
    %p59 = scmp.ne.s32.totalorder %s42, %s58
    %p60 = scmp.eq.s32.totalorder %s20, 0
    %p61 = por %p59, %p60
    %s62 = ssub.s32 %s21, %s33
    %s63 = ssub.s32 %s22, %s29
    %s64 = sor.u32 %s62, %s63
    %p65 = scmp.eq.s32.totalorder %s64, 0
    %s67 = sadd.s32 %s66, 1
    %s68 = scalar_select %p65, %s66, %s67
    %p71 = pneg %p65
    %p72 = scmp.eq.s32.totalorder %s14, 1
    %p73 = por %p71, %p72
    %p74 = scmp.ne.s32.totalorder %s66, %s69
    %p75 = scmp.eq.s32.totalorder %s14, 0
    %p76 = por %p74, %p75
    %p77 = scmp.ne.s32.totalorder %s66, %s69
    %p78 = scmp.eq.s32.totalorder %s19, 1
    %p79 = por %p77, %p78
    %p80 = scmp.ne.s32.totalorder %s69, %s70
    %p81 = scmp.eq.s32.totalorder %s19, 0
    %p82 = por %p80, %p81
    %p83 = scmp.ne.s32.totalorder %s69, %s70
    %p84 = scmp.eq.s32.totalorder %s20, 1
    %p85 = por %p83, %p84
    %p87 = scmp.ne.s32.totalorder %s70, %s86
    %p88 = scmp.eq.s32.totalorder %s20, 0
    %p89 = por %p87, %p88
    %s91 = sadd.s32 %s90, 1
    %p94 = scmp.eq.s32.totalorder %s14, 1
    %p95 = scmp.ne.s32.totalorder %s90, %s92
    %p96 = scmp.eq.s32.totalorder %s14, 0
    %p97 = por %p95, %p96
    %p98 = scmp.ne.s32.totalorder %s90, %s92
    %p99 = scmp.eq.s32.totalorder %s19, 1
    %p100 = por %p98, %p99
    %p101 = scmp.ne.s32.totalorder %s92, %s93
    %p102 = scmp.eq.s32.totalorder %s19, 0
    %p103 = por %p101, %p102
    %p104 = scmp.ne.s32.totalorder %s92, %s93
    %p105 = scmp.eq.s32.totalorder %s20, 1
    %p106 = por %p104, %p105
    %p108 = scmp.ne.s32.totalorder %s93, %s107
    %p109 = scmp.eq.s32.totalorder %s20, 0
    %p110 = por %p108, %p109
    %s112 = sadd.s32 %s111, 1
    %p115 = scmp.eq.s32.totalorder %s14, 1
    %p116 = scmp.ne.s32.totalorder %s111, %s113
    %p117 = scmp.eq.s32.totalorder %s14, 0
    %p118 = por %p116, %p117
    %p119 = scmp.ne.s32.totalorder %s111, %s113
    %p120 = scmp.eq.s32.totalorder %s19, 1
    %p121 = por %p119, %p120
    %p122 = scmp.ne.s32.totalorder %s113, %s114
    %p123 = scmp.eq.s32.totalorder %s19, 0
    %p124 = por %p122, %p123
    %p125 = scmp.ne.s32.totalorder %s113, %s114
    %p126 = scmp.eq.s32.totalorder %s20, 1
    %p127 = por %p125, %p126
    %p129 = scmp.ne.s32.totalorder %s114, %s128
    %p130 = scmp.eq.s32.totalorder %s20, 0
    %p131 = por %p129, %p130
    %s132 = ssub.s32 %s21, %s33
    %s133 = ssub.s32 %s22, %s29
    %s134 = sor.u32 %s132, %s133
    %p135 = scmp.eq.s32.totalorder %s134, 0
    %s137 = sadd.s32 %s136, 1
    %s138 = scalar_select %p135, %s136, %s137
    %p141 = pneg %p135
    %p142 = scmp.eq.s32.totalorder %s14, 1
    %p143 = por %p141, %p142
    %p144 = scmp.ne.s32.totalorder %s136, %s139
    %p145 = scmp.eq.s32.totalorder %s14, 0
    %p146 = por %p144, %p145
    %p147 = scmp.ne.s32.totalorder %s136, %s139
    %p148 = scmp.eq.s32.totalorder %s19, 1
    %p149 = por %p147, %p148
    %p150 = scmp.ne.s32.totalorder %s139, %s140
    %p151 = scmp.eq.s32.totalorder %s19, 0
    %p152 = por %p150, %p151
    %p153 = scmp.ne.s32.totalorder %s139, %s140
    %p154 = scmp.eq.s32.totalorder %s20, 1
    %p155 = por %p153, %p154
    %p157 = scmp.ne.s32.totalorder %s140, %s156
    %p158 = scmp.eq.s32.totalorder %s20, 0
    %p159 = por %p157, %p158
    %p160 = scmp.le.s32.totalorder 1, %s14
    %p161 = scmp.lt.s32.totalorder %s14, 3
    %p162 = pnand %p160, %p161
    %p163 = pneg %p162
    // Predicated region
    $region9: #{attention_block.5} parent=5 // pred_check
      _
    $region10: #{attention_block.5} parent=5 // pred_check_branch
      %165 = sbr.rel (%p162) target = $region12
    $region11: #{attention_block.5} parent=5 // pred_region
      %s166 = ssub.s32 %s14, 1
      // Predicated region
      $region13: #{attention_block.5} parent=11 // pred_check
        %p167 = pneg %p103
      $region14: #{attention_block.5} parent=11 // pred_check_branch
        %169 = sbr.rel (%p167) target = $region16
      $region15: #{attention_block.5} parent=11 // pred_region
        _
      $region16: #{attention_block.5} parent=11 // pred_fallthru
        _
      // Predicated region
      $region17: #{attention_block.5} parent=11 // pred_check
        %p170 = pneg %p124
      $region18: #{attention_block.5} parent=11 // pred_check_branch
        %172 = sbr.rel (%p170) target = $region20
      $region19: #{attention_block.5} parent=11 // pred_region
        _
      $region20: #{attention_block.5} parent=11 // pred_fallthru
        _
    $region12: #{attention_block.5} parent=5 // pred_fallthru
      _
    %p173 = scmp.lt.s32.totalorder %s14, 2
    // Predicated region
    $region21: #{attention_block.5} parent=5 // pred_check
      %p174 = pneg %p173
    $region22: #{attention_block.5} parent=5 // pred_check_branch
      %176 = sbr.rel (%p174) target = $region24
    $region23: #{attention_block.5} parent=5 // pred_region
      // Predicated region
      $region25: #{attention_block.5} parent=23 // pred_check
        %p177 = pneg %p48
      $region26: #{attention_block.5} parent=23 // pred_check_branch
        %179 = sbr.rel (%p177) target = $region28
      $region27: #{attention_block.5} parent=23 // pred_region
        %s180 = smul.u32 2, %s22
        %p181 = scmp.lt.s32.totalorder %s21, 1
        %s182 = scalar_select %p181, %s21, 1
        %p183 = scmp.lt.s32.totalorder %s180, 1
        %s184 = scalar_select %p183, %s180, 1
        %s185 = smul.addr %s182, 2
        %s186 = sadd.s32 %s184, %s185
        %s187 = smul.addr %s186, 4
        %s188 = scalar_lea.vmem %s0, %s187
        %s189 = smul.u32 2, %s22
      $region28: #{attention_block.5} parent=23 // pred_fallthru
        _
      // Predicated region
      $region29: #{attention_block.5} parent=23 // pred_check
        %p190 = pneg %p76
      $region30: #{attention_block.5} parent=23 // pred_check_branch
        %192 = sbr.rel (%p190) target = $region32
      $region31: #{attention_block.5} parent=23 // pred_region
        %s193 = smul.u32 2, %s22
        %p194 = scmp.lt.s32.totalorder %s21, 1
        %s195 = scalar_select %p194, %s21, 1
        %p196 = scmp.lt.s32.totalorder %s193, 1
        %s197 = scalar_select %p196, %s193, 1
        %s198 = smul.addr %s195, 2
        %s199 = sadd.s32 %s197, %s198
        %s200 = scalar_lea.vmem %s1, %s199
        %s201 = smul.u32 2, %s22
      $region32: #{attention_block.5} parent=23 // pred_fallthru
        _
    $region24: #{attention_block.5} parent=5 // pred_fallthru
      _
    %p202 = scmp.le.s32.totalorder 1, %s14
    %p203 = scmp.lt.s32.totalorder %s14, 3
    %p204 = pnand %p202, %p203
    %p205 = pneg %p204
    // Predicated region
    $region33: #{attention_block.5} parent=5 // pred_check
      _
    $region34: #{attention_block.5} parent=5 // pred_check_branch
      %207 = sbr.rel (%p204) target = $region36
    $region35: #{attention_block.5} parent=5 // pred_region
      %s208 = ssub.s32 %s14, 1
      %s209 = smul.u32 2, %s24
      %p210 = scmp.lt.s32.totalorder %s23, 1
      %s211 = scalar_select %p210, %s23, 1
      %p212 = scmp.lt.s32.totalorder %s209, 1
      %s213 = scalar_select %p212, %s209, 1
      %s214 = smul.addr %s211, 2
      %s215 = sadd.s32 %s213, %s214
      %s216 = smul.addr %s215, 4
      %s217 = scalar_lea.vmem %s0, %s216
      %p218 = pneg %p54
      %p219 = pneg %p51
      %s220 = smul.u32 2, %s24
      %p221 = scmp.lt.s32.totalorder %s23, 1
      %s222 = scalar_select %p221, %s23, 1
      %p223 = scmp.lt.s32.totalorder %s220, 1
      %s224 = scalar_select %p223, %s220, 1
      %s225 = smul.addr %s222, 2
      %s226 = sadd.s32 %s224, %s225
      %s227 = scalar_lea.vmem %s1, %s226
      %p228 = pneg %p82
      %p229 = pneg %p79
      %p230 = pneg %p103
      %p231 = pneg %p100
      %p232 = pneg %p124
      %p233 = pneg %p121
      %p234 = pneg %p152
      %p235 = pneg %p149
      %s236 = smul.u32 2, %s24
      %p237 = scmp.lt.s32.totalorder %s23, 1
      %s238 = scalar_select %p237, %s23, 1
      %p239 = scmp.lt.s32.totalorder %s236, 1
      %s240 = scalar_select %p239, %s236, 1
      %s241 = smul.addr %s238, 2
      %s242 = sadd.s32 %s240, %s241
      %s243 = smul.addr %s242, 4
      %s244 = scalar_lea.vmem %s4, %s243
      %s245 = smul.u32 2, %s24
      %p246 = scmp.lt.s32.totalorder %s23, 1
      %s247 = scalar_select %p246, %s23, 1
      %p248 = scmp.lt.s32.totalorder %s245, 1
      %s249 = scalar_select %p248, %s245, 1
      %s250 = smul.addr %s247, 2
      %s251 = sadd.s32 %s249, %s250
      %s252 = smul.addr %s251, 4
      %s253 = scalar_lea.vmem %s0, %s252
      %s254 = smul.u32 2, %s24
      %s255 = smul.u32 2, %s24
      %p256 = scmp.lt.s32.totalorder %s23, 1
      %s257 = scalar_select %p256, %s23, 1
      %p258 = scmp.lt.s32.totalorder %s255, 1
      %s259 = scalar_select %p258, %s255, 1
      %s260 = smul.addr %s257, 2
      %s261 = sadd.s32 %s259, %s260
      %s262 = scalar_lea.vmem %s1, %s261
      %s263 = smul.u32 2, %s24
      %s264 = smul.u32 2, %s24
      %p265 = scmp.lt.s32.totalorder %s23, 1
      %s266 = scalar_select %p265, %s23, 1
      %p267 = scmp.lt.s32.totalorder %s264, 1
      %s268 = scalar_select %p267, %s264, 1
      %s269 = smul.addr %s266, 2
      %s270 = sadd.s32 %s268, %s269
      %s271 = smul.addr %s270, 4
      %s272 = scalar_lea.vmem %s4, %s271
      %s273 = smul.u32 2, %s24
      %v274 = vld [vmem:[%s262] sm:$0x3]
      %v275 = vld [vmem:[#allocation2] sm:$0x1]
      %277 = vset.pattern.permute.xlu0 0
      %278 = vperm.xlu0 %277, %v275
      %v279 = vpop.permute.xlu0 %278
      %v281 = vlaneseq
      %v282 = vshrl.u32 %v281, 7
      %v283 = vsub.s32 0, %v282
      %v284 = vrot.slane %v279, %v283
      %v285 = vmul.f32 %v274, %v284
      %v286 = vld [vmem:[#allocation3] sm:$0x1]
      %288 = vset.pattern.permute.xlu0 0
      %289 = vperm.xlu0 %288, %v286
      %v290 = vpop.permute.xlu0 %289
      %v292 = vlaneseq
      %v293 = vshrl.u32 %v292, 7
      %v294 = vsub.s32 0, %v293
      %v295 = vrot.slane %v290, %v294
      %v296 = vadd.f32 %v285, %v295
      %v297 = vsub.f32 0.0, %v296
      %v298 = vmul.f32 %v297, 1.442695
      %v299 = vpow.pop %v298
      %v300 = vadd.f32 %v299, 1.0
      %v301 = vrcp.pop %v300
      %v302 = vmul.f32 1.0, %v301
      %v303 = vld [vmem:[%s253] sm:$0xff]
      %v305 = vlaneseq
      %v306 = vshrl.u32 %v305, 7
      %v307 = vsub.s32 0, %v306
      %v308 = vrot.slane %v302, %v307
      %v309 = vlaneseq
      %v310 = vshrl.u32 %v309, 7
      %v311 = vsub.s32 1, %v310
      %v312 = vrot.slane %v302, %v311
      %v313 = vcombine.low %v308, %v312
      %v315 = vmul.f32 %v303, %v313
      %316 = vst [vmem:[%s272] sm:$0xff] %v315
      %s317 = smul.u32 2, %s24
      %p318 = scmp.lt.s32.totalorder %s23, 1
      %s319 = scalar_select %p318, %s23, 1
      %p320 = scmp.lt.s32.totalorder %s317, 1
      %s321 = scalar_select %p320, %s317, 1
      %s322 = smul.addr %s319, 2
      %s323 = sadd.s32 %s321, %s322
      %s324 = smul.addr %s323, 4
      %s325 = scalar_lea.vmem %s4, %s324
      // Predicated region
      $region37: #{attention_block.5} parent=35 // pred_check
        %p326 = pneg %p149
      $region38: #{attention_block.5} parent=35 // pred_check_branch
        %328 = sbr.rel (%p326) target = $region40
      $region39: #{attention_block.5} parent=35 // pred_region
        %s329 = smul.u32 2, %s24
      $region40: #{attention_block.5} parent=35 // pred_fallthru
        _
    $region36: #{attention_block.5} parent=5 // pred_fallthru
      _
    %p330 = scmp.le.s32.totalorder 2, %s14
    // Predicated region
    $region41: #{attention_block.5} parent=5 // pred_check
      %p331 = pneg %p330
    $region42: #{attention_block.5} parent=5 // pred_check_branch
      %333 = sbr.rel (%p331) target = $region44
    $region43: #{attention_block.5} parent=5 // pred_region
      %s334 = ssub.s32 %s14, 2
      // Predicated region
      $region45: #{attention_block.5} parent=43 // pred_check
        %p335 = pneg %p155
      $region46: #{attention_block.5} parent=43 // pred_check_branch
        %337 = sbr.rel (%p335) target = $region48
      $region47: #{attention_block.5} parent=43 // pred_region
        %s338 = smul.u32 2, %s26
        %p339 = scmp.lt.s32.totalorder %s25, 1
        %s340 = scalar_select %p339, %s25, 1
        %p341 = scmp.lt.s32.totalorder %s338, 1
        %s342 = scalar_select %p341, %s338, 1
        %s343 = smul.addr %s340, 2
        %s344 = sadd.s32 %s342, %s343
        %s345 = smul.addr %s344, 4
        %s346 = scalar_lea.vmem %s4, %s345
      $region48: #{attention_block.5} parent=43 // pred_fallthru
        _
    $region44: #{attention_block.5} parent=5 // pred_fallthru
      _
  $region6: #{attention_block.5} parent=0 // loop_footer
    %s18 = sadd.s32 1, %s14
  $region7: #{attention_block.5} parent=0 // loop_footer_branch
    %13 = sbr.rel target = $region3
  $region8: #{attention_block.5} parent=0 // loop_exit
    _

// kernel: attention_block.3
$region0: #{attention_block.3}
  #allocation0 [shape = 'u32[]', space=smem, size = 0x4, offset = 0x4, fixed_abs, tag = 'smem constant byte address 0x4 - core index']
  #allocation1 [shape = 'u32[144,128]{1,0:T(1,128)}', space=vmem, size = 0x12000, scoped, tag = 'internal scratch']
  %s0 = inlined_call_operand.vmem [shape: f32[2,4,256], index: 0, kind: input, shape index: {}]
  %s1 = inlined_call_operand.vmem [shape: f32[2,4,256], index: 1, kind: input, shape index: {}]
  %s2 = inlined_call_operand.vmem [shape: f32[8,4], index: 2, kind: input, shape index: {}]
  %s3 = inlined_call_operand.vmem [shape: f32[8,1], index: 3, kind: input, shape index: {}]
  %s4 = inlined_call_operand.vmem [shape: f32[8,4], index: 4, kind: input, shape index: {}]
  %s5 = inlined_call_operand.vmem [shape: f32[8,1], index: 5, kind: input, shape index: {}]
  %s6 = inlined_call_operand.vmem [shape: f32[8,1], index: 6, kind: output, shape index: {0}]
  %s7 = inlined_call_operand.vmem [shape: f32[8,1], index: 7, kind: output, shape index: {1}]
  %s8 = inlined_call_operand.vmem [shape: f32[8,1], index: 8, kind: output, shape index: {2}]
  %s9 = inlined_call_operand.vmem [shape: f32[8,1], index: 9, kind: output, shape index: {3}]
  %10 = xla_tuple %s6, %s7, %s8, %s9
  %s11 = sld [smem:[#allocation0]]
  $region85: #{attention_block.3} parent=0
    _
  %s13 = ssub.s32 1, %s11
  %s14 = scalar_select 0, %s13, %s11
  loop: start=0, step=1, limit=4
  $region2: #{attention_block.3} parent=0 // loop_pre_header
    _
  $region3: #{attention_block.3} parent=0 // loop_header
    %s16 = sphi 0, %s20
    %p17 = scmp.ge.s32.totalorder %s16, 4
    %s23 = sphi 0, %s35
    %s24 = sphi 0, %s31
    %s25 = sphi 0, %s23
    %s26 = sphi 0, %s24
    %s27 = sphi 0, %s25
    %s28 = sphi 0, %s26
    %s40 = sphi 0, %s42
    %s43 = sphi 0, %s40
    %s44 = sphi 0, %s43
    %s60 = sphi 0, %s44
    %s68 = sphi 0, %s70
    %s71 = sphi 0, %s68
    %s72 = sphi 0, %s71
    %s88 = sphi 0, %s72
    %s92 = sphi 0, %s92
    %s94 = sphi 0, %s92
    %s95 = sphi 0, %s94
    %s109 = sphi 0, %s95
    %s113 = sphi 0, %s113
    %s115 = sphi 0, %s113
    %s116 = sphi 0, %s115
    %s130 = sphi 0, %s116
    %s134 = sphi 0, %s134
    %s136 = sphi 0, %s134
    %s137 = sphi 0, %s136
    %s151 = sphi 0, %s137
    %s155 = sphi 0, %s155
    %s157 = sphi 0, %s155
    %s158 = sphi 0, %s157
    %s172 = sphi 0, %s158
    %s176 = sphi 0, %s176
    %s178 = sphi 0, %s176
    %s179 = sphi 0, %s178
    %s193 = sphi 0, %s179
    %s197 = sphi 0, %s197
    %s199 = sphi 0, %s197
    %s200 = sphi 0, %s199
    %s214 = sphi 0, %s200
    %s218 = sphi 0, %s218
    %s220 = sphi 0, %s218
    %s221 = sphi 0, %s220
    %s235 = sphi 0, %s221
    %s239 = sphi 0, %s239
    %s241 = sphi 0, %s239
    %s242 = sphi 0, %s241
    %s256 = sphi 0, %s242
  $region4: #{attention_block.3} parent=0 // loop_header_branch
    %19 = sbr.rel (%p17) target = $region8
  $region5: #{attention_block.3} parent=0 // loop_body
    %s21 = ssub.s32 %s16, 1
    %s22 = ssub.s32 %s16, 2
    %s29 = sadd.s32 1, %s24
    %p30 = scmp.ge.s32.totalorder %s29, 1
    %s31 = scalar_select %p30, 0, %s29
    %s32 = sadd.s32 1, %s23
    %s33 = scalar_select %p30, %s32, %s23
    %p34 = scmp.ge.s32.totalorder %s33, 2
    %s35 = scalar_select %p34, 0, %s33
    %s36 = ssub.s32 %s23, %s35
    %s37 = ssub.s32 %s24, %s31
    %s38 = sor.u32 %s36, %s37
    %p39 = scmp.eq.s32.totalorder %s38, 0
    %s41 = sadd.s32 %s40, 1
    %s42 = scalar_select %p39, %s40, %s41
    %p45 = pneg %p39
    %p46 = scmp.eq.s32.totalorder %s16, 1
    %p47 = por %p45, %p46
    %p48 = scmp.ne.s32.totalorder %s40, %s43
    %p49 = scmp.eq.s32.totalorder %s16, 0
    %p50 = por %p48, %p49
    %p51 = scmp.ne.s32.totalorder %s40, %s43
    %p52 = scmp.eq.s32.totalorder %s21, 1
    %p53 = por %p51, %p52
    %p54 = scmp.ne.s32.totalorder %s43, %s44
    %p55 = scmp.eq.s32.totalorder %s21, 0
    %p56 = por %p54, %p55
    %p57 = scmp.ne.s32.totalorder %s43, %s44
    %p58 = scmp.eq.s32.totalorder %s22, 1
    %p59 = por %p57, %p58
    %p61 = scmp.ne.s32.totalorder %s44, %s60
    %p62 = scmp.eq.s32.totalorder %s22, 0
    %p63 = por %p61, %p62
    %s64 = ssub.s32 %s23, %s35
    %s65 = ssub.s32 %s24, %s31
    %s66 = sor.u32 %s64, %s65
    %p67 = scmp.eq.s32.totalorder %s66, 0
    %s69 = sadd.s32 %s68, 1
    %s70 = scalar_select %p67, %s68, %s69
    %p73 = pneg %p67
    %p74 = scmp.eq.s32.totalorder %s16, 1
    %p75 = por %p73, %p74
    %p76 = scmp.ne.s32.totalorder %s68, %s71
    %p77 = scmp.eq.s32.totalorder %s16, 0
    %p78 = por %p76, %p77
    %p79 = scmp.ne.s32.totalorder %s68, %s71
    %p80 = scmp.eq.s32.totalorder %s21, 1
    %p81 = por %p79, %p80
    %p82 = scmp.ne.s32.totalorder %s71, %s72
    %p83 = scmp.eq.s32.totalorder %s21, 0
    %p84 = por %p82, %p83
    %p85 = scmp.ne.s32.totalorder %s71, %s72
    %p86 = scmp.eq.s32.totalorder %s22, 1
    %p87 = por %p85, %p86
    %p89 = scmp.ne.s32.totalorder %s72, %s88
    %p90 = scmp.eq.s32.totalorder %s22, 0
    %p91 = por %p89, %p90
    %s93 = sadd.s32 %s92, 1
    %p96 = scmp.eq.s32.totalorder %s16, 1
    %p97 = scmp.ne.s32.totalorder %s92, %s94
    %p98 = scmp.eq.s32.totalorder %s16, 0
    %p99 = por %p97, %p98
    %p100 = scmp.ne.s32.totalorder %s92, %s94
    %p101 = scmp.eq.s32.totalorder %s21, 1
    %p102 = por %p100, %p101
    %p103 = scmp.ne.s32.totalorder %s94, %s95
    %p104 = scmp.eq.s32.totalorder %s21, 0
    %p105 = por %p103, %p104
    %p106 = scmp.ne.s32.totalorder %s94, %s95
    %p107 = scmp.eq.s32.totalorder %s22, 1
    %p108 = por %p106, %p107
    %p110 = scmp.ne.s32.totalorder %s95, %s109
    %p111 = scmp.eq.s32.totalorder %s22, 0
    %p112 = por %p110, %p111
    %s114 = sadd.s32 %s113, 1
    %p117 = scmp.eq.s32.totalorder %s16, 1
    %p118 = scmp.ne.s32.totalorder %s113, %s115
    %p119 = scmp.eq.s32.totalorder %s16, 0
    %p120 = por %p118, %p119
    %p121 = scmp.ne.s32.totalorder %s113, %s115
    %p122 = scmp.eq.s32.totalorder %s21, 1
    %p123 = por %p121, %p122
    %p124 = scmp.ne.s32.totalorder %s115, %s116
    %p125 = scmp.eq.s32.totalorder %s21, 0
    %p126 = por %p124, %p125
    %p127 = scmp.ne.s32.totalorder %s115, %s116
    %p128 = scmp.eq.s32.totalorder %s22, 1
    %p129 = por %p127, %p128
    %p131 = scmp.ne.s32.totalorder %s116, %s130
    %p132 = scmp.eq.s32.totalorder %s22, 0
    %p133 = por %p131, %p132
    %s135 = sadd.s32 %s134, 1
    %p138 = scmp.eq.s32.totalorder %s16, 1
    %p139 = scmp.ne.s32.totalorder %s134, %s136
    %p140 = scmp.eq.s32.totalorder %s16, 0
    %p141 = por %p139, %p140
    %p142 = scmp.ne.s32.totalorder %s134, %s136
    %p143 = scmp.eq.s32.totalorder %s21, 1
    %p144 = por %p142, %p143
    %p145 = scmp.ne.s32.totalorder %s136, %s137
    %p146 = scmp.eq.s32.totalorder %s21, 0
    %p147 = por %p145, %p146
    %p148 = scmp.ne.s32.totalorder %s136, %s137
    %p149 = scmp.eq.s32.totalorder %s22, 1
    %p150 = por %p148, %p149
    %p152 = scmp.ne.s32.totalorder %s137, %s151
    %p153 = scmp.eq.s32.totalorder %s22, 0
    %p154 = por %p152, %p153
    %s156 = sadd.s32 %s155, 1
    %p159 = scmp.eq.s32.totalorder %s16, 1
    %p160 = scmp.ne.s32.totalorder %s155, %s157
    %p161 = scmp.eq.s32.totalorder %s16, 0
    %p162 = por %p160, %p161
    %p163 = scmp.ne.s32.totalorder %s155, %s157
    %p164 = scmp.eq.s32.totalorder %s21, 1
    %p165 = por %p163, %p164
    %p166 = scmp.ne.s32.totalorder %s157, %s158
    %p167 = scmp.eq.s32.totalorder %s21, 0
    %p168 = por %p166, %p167
    %p169 = scmp.ne.s32.totalorder %s157, %s158
    %p170 = scmp.eq.s32.totalorder %s22, 1
    %p171 = por %p169, %p170
    %p173 = scmp.ne.s32.totalorder %s158, %s172
    %p174 = scmp.eq.s32.totalorder %s22, 0
    %p175 = por %p173, %p174
    %s177 = sadd.s32 %s176, 1
    %p180 = scmp.eq.s32.totalorder %s16, 1
    %p181 = scmp.ne.s32.totalorder %s176, %s178
    %p182 = scmp.eq.s32.totalorder %s16, 0
    %p183 = por %p181, %p182
    %p184 = scmp.ne.s32.totalorder %s176, %s178
    %p185 = scmp.eq.s32.totalorder %s21, 1
    %p186 = por %p184, %p185
    %p187 = scmp.ne.s32.totalorder %s178, %s179
    %p188 = scmp.eq.s32.totalorder %s21, 0
    %p189 = por %p187, %p188
    %p190 = scmp.ne.s32.totalorder %s178, %s179
    %p191 = scmp.eq.s32.totalorder %s22, 1
    %p192 = por %p190, %p191
    %p194 = scmp.ne.s32.totalorder %s179, %s193
    %p195 = scmp.eq.s32.totalorder %s22, 0
    %p196 = por %p194, %p195
    %s198 = sadd.s32 %s197, 1
    %p201 = scmp.eq.s32.totalorder %s16, 1
    %p202 = scmp.ne.s32.totalorder %s197, %s199
    %p203 = scmp.eq.s32.totalorder %s16, 0
    %p204 = por %p202, %p203
    %p205 = scmp.ne.s32.totalorder %s197, %s199
    %p206 = scmp.eq.s32.totalorder %s21, 1
    %p207 = por %p205, %p206
    %p208 = scmp.ne.s32.totalorder %s199, %s200
    %p209 = scmp.eq.s32.totalorder %s21, 0
    %p210 = por %p208, %p209
    %p211 = scmp.ne.s32.totalorder %s199, %s200
    %p212 = scmp.eq.s32.totalorder %s22, 1
    %p213 = por %p211, %p212
    %p215 = scmp.ne.s32.totalorder %s200, %s214
    %p216 = scmp.eq.s32.totalorder %s22, 0
    %p217 = por %p215, %p216
    %s219 = sadd.s32 %s218, 1
    %p222 = scmp.eq.s32.totalorder %s16, 1
    %p223 = scmp.ne.s32.totalorder %s218, %s220
    %p224 = scmp.eq.s32.totalorder %s16, 0
    %p225 = por %p223, %p224
    %p226 = scmp.ne.s32.totalorder %s218, %s220
    %p227 = scmp.eq.s32.totalorder %s21, 1
    %p228 = por %p226, %p227
    %p229 = scmp.ne.s32.totalorder %s220, %s221
    %p230 = scmp.eq.s32.totalorder %s21, 0
    %p231 = por %p229, %p230
    %p232 = scmp.ne.s32.totalorder %s220, %s221
    %p233 = scmp.eq.s32.totalorder %s22, 1
    %p234 = por %p232, %p233
    %p236 = scmp.ne.s32.totalorder %s221, %s235
    %p237 = scmp.eq.s32.totalorder %s22, 0
    %p238 = por %p236, %p237
    %s240 = sadd.s32 %s239, 1
    %p243 = scmp.eq.s32.totalorder %s16, 1
    %p244 = scmp.ne.s32.totalorder %s239, %s241
    %p245 = scmp.eq.s32.totalorder %s16, 0
    %p246 = por %p244, %p245
    %p247 = scmp.ne.s32.totalorder %s239, %s241
    %p248 = scmp.eq.s32.totalorder %s21, 1
    %p249 = por %p247, %p248
    %p250 = scmp.ne.s32.totalorder %s241, %s242
    %p251 = scmp.eq.s32.totalorder %s21, 0
    %p252 = por %p250, %p251
    %p253 = scmp.ne.s32.totalorder %s241, %s242
    %p254 = scmp.eq.s32.totalorder %s22, 1
    %p255 = por %p253, %p254
    %p257 = scmp.ne.s32.totalorder %s242, %s256
    %p258 = scmp.eq.s32.totalorder %s22, 0
    %p259 = por %p257, %p258
    %p260 = scmp.le.s32.totalorder 1, %s16
    %p261 = scmp.lt.s32.totalorder %s16, 3
    %p262 = pnand %p260, %p261
    %p263 = pneg %p262
    // Predicated region
    $region9: #{attention_block.3} parent=5 // pred_check
      _
    $region10: #{attention_block.3} parent=5 // pred_check_branch
      %265 = sbr.rel (%p262) target = $region12
    $region11: #{attention_block.3} parent=5 // pred_region
      %s266 = ssub.s32 %s16, 1
      // Predicated region
      $region13: #{attention_block.3} parent=11 // pred_check
        %p267 = pneg %p105
      $region14: #{attention_block.3} parent=11 // pred_check_branch
        %269 = sbr.rel (%p267) target = $region16
      $region15: #{attention_block.3} parent=11 // pred_region
        _
      $region16: #{attention_block.3} parent=11 // pred_fallthru
        _
      // Predicated region
      $region17: #{attention_block.3} parent=11 // pred_check
        %p270 = pneg %p126
      $region18: #{attention_block.3} parent=11 // pred_check_branch
        %272 = sbr.rel (%p270) target = $region20
      $region19: #{attention_block.3} parent=11 // pred_region
        _
      $region20: #{attention_block.3} parent=11 // pred_fallthru
        _
      // Predicated region
      $region21: #{attention_block.3} parent=11 // pred_check
        %p273 = pneg %p147
      $region22: #{attention_block.3} parent=11 // pred_check_branch
        %275 = sbr.rel (%p273) target = $region24
      $region23: #{attention_block.3} parent=11 // pred_region
        _
      $region24: #{attention_block.3} parent=11 // pred_fallthru
        _
      // Predicated region
      $region25: #{attention_block.3} parent=11 // pred_check
        %p276 = pneg %p168
      $region26: #{attention_block.3} parent=11 // pred_check_branch
        %278 = sbr.rel (%p276) target = $region28
      $region27: #{attention_block.3} parent=11 // pred_region
        _
      $region28: #{attention_block.3} parent=11 // pred_fallthru
        _
    $region12: #{attention_block.3} parent=5 // pred_fallthru
      _
    %p279 = scmp.lt.s32.totalorder %s16, 2
    // Predicated region
    $region29: #{attention_block.3} parent=5 // pred_check
      %p280 = pneg %p279
    $region30: #{attention_block.3} parent=5 // pred_check_branch
      %282 = sbr.rel (%p280) target = $region32
    $region31: #{attention_block.3} parent=5 // pred_region
      // Predicated region
      $region33: #{attention_block.3} parent=31 // pred_check
        %p283 = pneg %p50
      $region34: #{attention_block.3} parent=31 // pred_check_branch
        %285 = sbr.rel (%p283) target = $region36
      $region35: #{attention_block.3} parent=31 // pred_region
        %s286 = smul.u32 2, %s24
        %p287 = scmp.lt.s32.totalorder %s23, 1
        %s288 = scalar_select %p287, %s23, 1
        %p289 = scmp.lt.s32.totalorder %s286, 1
        %s290 = scalar_select %p289, %s286, 1
        %s291 = smul.addr %s288, 2
        %s292 = sadd.s32 %s290, %s291
        %s293 = smul.addr %s292, 4
        %s294 = scalar_lea.vmem %s0, %s293
        %s295 = smul.u32 2, %s24
      $region36: #{attention_block.3} parent=31 // pred_fallthru
        _
      // Predicated region
      $region37: #{attention_block.3} parent=31 // pred_check
        %p296 = pneg %p78
      $region38: #{attention_block.3} parent=31 // pred_check_branch
        %298 = sbr.rel (%p296) target = $region40
      $region39: #{attention_block.3} parent=31 // pred_region
        %s299 = smul.u32 2, %s24
        %p300 = scmp.lt.s32.totalorder %s23, 1
        %s301 = scalar_select %p300, %s23, 1
        %p302 = scmp.lt.s32.totalorder %s299, 1
        %s303 = scalar_select %p302, %s299, 1
        %s304 = smul.addr %s301, 2
        %s305 = sadd.s32 %s303, %s304
        %s306 = smul.addr %s305, 4
        %s307 = scalar_lea.vmem %s1, %s306
        %s308 = smul.u32 2, %s24
      $region40: #{attention_block.3} parent=31 // pred_fallthru
        _
    $region32: #{attention_block.3} parent=5 // pred_fallthru
      _
    %p309 = scmp.le.s32.totalorder 1, %s16
    %p310 = scmp.lt.s32.totalorder %s16, 3
    %p311 = pnand %p309, %p310
    %p312 = pneg %p311
    // Predicated region
    $region41: #{attention_block.3} parent=5 // pred_check
      _
    $region42: #{attention_block.3} parent=5 // pred_check_branch
      %314 = sbr.rel (%p311) target = $region44
    $region43: #{attention_block.3} parent=5 // pred_region
      %s315 = ssub.s32 %s16, 1
      %s316 = smul.u32 2, %s26
      %p317 = scmp.lt.s32.totalorder %s25, 1
      %s318 = scalar_select %p317, %s25, 1
      %p319 = scmp.lt.s32.totalorder %s316, 1
      %s320 = scalar_select %p319, %s316, 1
      %s321 = smul.addr %s318, 2
      %s322 = sadd.s32 %s320, %s321
      %s323 = smul.addr %s322, 4
      %s324 = scalar_lea.vmem %s0, %s323
      %p325 = pneg %p56
      %p326 = pneg %p53
      %s327 = smul.u32 2, %s26
      %p328 = scmp.lt.s32.totalorder %s25, 1
      %s329 = scalar_select %p328, %s25, 1
      %p330 = scmp.lt.s32.totalorder %s327, 1
      %s331 = scalar_select %p330, %s327, 1
      %s332 = smul.addr %s329, 2
      %s333 = sadd.s32 %s331, %s332
      %s334 = smul.addr %s333, 4
      %s335 = scalar_lea.vmem %s1, %s334
      %p336 = pneg %p84
      %p337 = pneg %p81
      %p338 = pneg %p105
      %p339 = pneg %p102
      %p340 = pneg %p126
      %p341 = pneg %p123
      %p342 = pneg %p147
      %p343 = pneg %p144
      %p344 = pneg %p168
      %p345 = pneg %p165
      %p346 = pneg %p189
      %p347 = pneg %p186
      %p348 = pneg %p210
      %p349 = pneg %p207
      %p350 = pneg %p231
      %p351 = pneg %p228
      %p352 = pneg %p252
      %p353 = pneg %p249
      %s354 = smul.u32 2, %s26
      %p355 = scmp.lt.s32.totalorder %s25, 1
      %s356 = scalar_select %p355, %s25, 1
      %p357 = scmp.lt.s32.totalorder %s354, 1
      %s358 = scalar_select %p357, %s354, 1
      %s359 = smul.addr %s356, 2
      %s360 = sadd.s32 %s358, %s359
      %s361 = smul.addr %s360, 4
      %s362 = scalar_lea.vmem %s0, %s361
      %s363 = smul.u32 2, %s26
      %s364 = smul.u32 2, %s26
      %p365 = scmp.lt.s32.totalorder %s25, 1
      %s366 = scalar_select %p365, %s25, 1
      %p367 = scmp.lt.s32.totalorder %s364, 1
      %s368 = scalar_select %p367, %s364, 1
      %s369 = smul.addr %s366, 2
      %s370 = sadd.s32 %s368, %s369
      %s371 = smul.addr %s370, 4
      %s372 = scalar_lea.vmem %s1, %s371
      %s373 = smul.u32 2, %s26
      %p374 = scmp.eq.s32.totalorder %s25, 0
      %p375 = scmp.eq.s32.totalorder %s26, 0
      %p376 = pnand %p374, %p375
      %p377 = pneg %p376
      // Predicated region
      $region45: #{attention_block.3} parent=43 // pred_check
        _
      $region46: #{attention_block.3} parent=43 // pred_check_branch
        %379 = sbr.rel (%p376) target = $region48
      $region47: #{attention_block.3} parent=43 // pred_region
        %vm380 = vcmask 7168
        %381 = vst.msk [vmem:[%s6] sm:$0xff] %vm380, 0.0
        %382 = vst.msk [vmem:[%s7] sm:$0xff] %vm380, 0.0
        %383 = vst.msk [vmem:[%s8] sm:$0xff] %vm380, 0.0
        %384 = vst.msk [vmem:[%s9] sm:$0xff] %vm380, 0.0
      $region48: #{attention_block.3} parent=43 // pred_fallthru
        _
      %v385 = vld [vmem:[%s2] sm:$0xff]
      %v386 = vld [vmem:[%s3] sm:$0xff]
      %v387 = vld [vmem:[%s362] sm:$0xff]
      %389 = vset.pattern.permute.xlu0 0
      %390 = vperm.xlu0 %389, %v385
      %v391 = vpop.permute.xlu0 %390
      %v394 = vlaneseq
      %v395 = vshrl.u32 %v394, 7
      %v396 = vsub.s32 0, %v395
      %v397 = vrot.slane %v387, %v396
      %v398 = vlaneseq
      %v399 = vshrl.u32 %v398, 7
      %v400 = vsub.s32 4, %v399
      %v401 = vrot.slane %v387, %v400
      %v404 = vlaneseq
      %v405 = vshrl.u32 %v404, 7
      %v406 = vsub.s32 0, %v405
      %v407 = vrot.slane %v397, %v406
      %v408 = vlaneseq
      %v409 = vshrl.u32 %v408, 7
      %v410 = vsub.s32 0, %v409
      %v411 = vrot.slane %v401, %v410
      %v412 = vmul.f32 %v391, %v407
      %v413 = vmul.f32 %v391, %v411
      %414 = vset.pattern.permute.xlu0 1
      %415 = vperm.xlu0 %414, %v385
      %v416 = vpop.permute.xlu0 %415
      %v418 = vlaneseq
      %v419 = vshrl.u32 %v418, 7
      %v420 = vsub.s32 1, %v419
      %v421 = vrot.slane %v387, %v420
      %v422 = vlaneseq
      %v423 = vshrl.u32 %v422, 7
      %v424 = vsub.s32 5, %v423
      %v425 = vrot.slane %v387, %v424
      %v428 = vlaneseq
      %v429 = vshrl.u32 %v428, 7
      %v430 = vsub.s32 1, %v429
      %v431 = vrot.slane %v421, %v430
      %v432 = vlaneseq
      %v433 = vshrl.u32 %v432, 7
      %v434 = vsub.s32 1, %v433
      %v435 = vrot.slane %v425, %v434
      %v436 = vmul.f32 %v416, %v431
      %v437 = vmul.f32 %v416, %v435
      %v438 = vadd.f32 %v412, %v436
      %v439 = vadd.f32 %v413, %v437
      %440 = vset.pattern.permute.xlu0 2
      %441 = vperm.xlu0 %440, %v385
      %v442 = vpop.permute.xlu0 %441
      %v444 = vlaneseq
      %v445 = vshrl.u32 %v444, 7
      %v446 = vsub.s32 2, %v445
      %v447 = vrot.slane %v387, %v446
      %v448 = vlaneseq
      %v449 = vshrl.u32 %v448, 7
      %v450 = vsub.s32 6, %v449
      %v451 = vrot.slane %v387, %v450
      %v454 = vlaneseq
      %v455 = vshrl.u32 %v454, 7
      %v456 = vsub.s32 2, %v455
      %v457 = vrot.slane %v447, %v456
      %v458 = vlaneseq
      %v459 = vshrl.u32 %v458, 7
      %v460 = vsub.s32 2, %v459
      %v461 = vrot.slane %v451, %v460
      %v462 = vmul.f32 %v442, %v457
      %v463 = vmul.f32 %v442, %v461
      %v464 = vadd.f32 %v438, %v462
      %v465 = vadd.f32 %v439, %v463
      %466 = vset.pattern.permute.xlu0 3
      %467 = vperm.xlu0 %466, %v385
      %v468 = vpop.permute.xlu0 %467
      %v470 = vlaneseq
      %v471 = vshrl.u32 %v470, 7
      %v472 = vsub.s32 3, %v471
      %v473 = vrot.slane %v387, %v472
      %v474 = vlaneseq
      %v475 = vshrl.u32 %v474, 7
      %v476 = vsub.s32 7, %v475
      %v477 = vrot.slane %v387, %v476
      %v480 = vlaneseq
      %v481 = vshrl.u32 %v480, 7
      %v482 = vsub.s32 3, %v481
      %v483 = vrot.slane %v473, %v482
      %v484 = vlaneseq
      %v485 = vshrl.u32 %v484, 7
      %v486 = vsub.s32 3, %v485
      %v487 = vrot.slane %v477, %v486
      %v488 = vmul.f32 %v468, %v483
      %v489 = vmul.f32 %v468, %v487
      %v490 = vadd.f32 %v464, %v488
      %v491 = vadd.f32 %v465, %v489
      %493 = vset.pattern.permute.xlu0 0
      %494 = vperm.xlu0 %493, %v386
      %v495 = vpop.permute.xlu0 %494
      %v497 = vadd.f32 %v490, %v495
      %v498 = vadd.f32 %v491, %v495
      %v499 = vld [vmem:[%s4] sm:$0xff]
      %v500 = vld [vmem:[%s5] sm:$0xff]
      %v501 = vld [vmem:[%s372] sm:$0xff]
      %503 = vset.pattern.permute.xlu0 0
      %504 = vperm.xlu0 %503, %v499
      %v505 = vpop.permute.xlu0 %504
      %v508 = vlaneseq
      %v509 = vshrl.u32 %v508, 7
      %v510 = vsub.s32 0, %v509
      %v511 = vrot.slane %v501, %v510
      %v512 = vlaneseq
      %v513 = vshrl.u32 %v512, 7
      %v514 = vsub.s32 4, %v513
      %v515 = vrot.slane %v501, %v514
      %v518 = vlaneseq
      %v519 = vshrl.u32 %v518, 7
      %v520 = vsub.s32 0, %v519
      %v521 = vrot.slane %v511, %v520
      %v522 = vlaneseq
      %v523 = vshrl.u32 %v522, 7
      %v524 = vsub.s32 0, %v523
      %v525 = vrot.slane %v515, %v524
      %v526 = vmul.f32 %v505, %v521
      %v527 = vmul.f32 %v505, %v525
      %528 = vset.pattern.permute.xlu0 1
      %529 = vperm.xlu0 %528, %v499
      %v530 = vpop.permute.xlu0 %529
      %v532 = vlaneseq
      %v533 = vshrl.u32 %v532, 7
      %v534 = vsub.s32 1, %v533
      %v535 = vrot.slane %v501, %v534
      %v536 = vlaneseq
      %v537 = vshrl.u32 %v536, 7
      %v538 = vsub.s32 5, %v537
      %v539 = vrot.slane %v501, %v538
      %v542 = vlaneseq
      %v543 = vshrl.u32 %v542, 7
      %v544 = vsub.s32 1, %v543
      %v545 = vrot.slane %v535, %v544
      %v546 = vlaneseq
      %v547 = vshrl.u32 %v546, 7
      %v548 = vsub.s32 1, %v547
      %v549 = vrot.slane %v539, %v548
      %v550 = vmul.f32 %v530, %v545
      %v551 = vmul.f32 %v530, %v549
      %v552 = vadd.f32 %v526, %v550
      %v553 = vadd.f32 %v527, %v551
      %554 = vset.pattern.permute.xlu0 2
      %555 = vperm.xlu0 %554, %v499
      %v556 = vpop.permute.xlu0 %555
      %v558 = vlaneseq
      %v559 = vshrl.u32 %v558, 7
      %v560 = vsub.s32 2, %v559
      %v561 = vrot.slane %v501, %v560
      %v562 = vlaneseq
      %v563 = vshrl.u32 %v562, 7
      %v564 = vsub.s32 6, %v563
      %v565 = vrot.slane %v501, %v564
      %v568 = vlaneseq
      %v569 = vshrl.u32 %v568, 7
      %v570 = vsub.s32 2, %v569
      %v571 = vrot.slane %v561, %v570
      %v572 = vlaneseq
      %v573 = vshrl.u32 %v572, 7
      %v574 = vsub.s32 2, %v573
      %v575 = vrot.slane %v565, %v574
      %v576 = vmul.f32 %v556, %v571
      %v577 = vmul.f32 %v556, %v575
      %v578 = vadd.f32 %v552, %v576
      %v579 = vadd.f32 %v553, %v577
      %580 = vset.pattern.permute.xlu0 3
      %581 = vperm.xlu0 %580, %v499
      %v582 = vpop.permute.xlu0 %581
      %v584 = vlaneseq
      %v585 = vshrl.u32 %v584, 7
      %v586 = vsub.s32 3, %v585
      %v587 = vrot.slane %v501, %v586
      %v588 = vlaneseq
      %v589 = vshrl.u32 %v588, 7
      %v590 = vsub.s32 7, %v589
      %v591 = vrot.slane %v501, %v590
      %v594 = vlaneseq
      %v595 = vshrl.u32 %v594, 7
      %v596 = vsub.s32 3, %v595
      %v597 = vrot.slane %v587, %v596
      %v598 = vlaneseq
      %v599 = vshrl.u32 %v598, 7
      %v600 = vsub.s32 3, %v599
      %v601 = vrot.slane %v591, %v600
      %v602 = vmul.f32 %v582, %v597
      %v603 = vmul.f32 %v582, %v601
      %v604 = vadd.f32 %v578, %v602
      %v605 = vadd.f32 %v579, %v603
      %607 = vset.pattern.permute.xlu0 0
      %608 = vperm.xlu0 %607, %v500
      %v609 = vpop.permute.xlu0 %608
      %v611 = vadd.f32 %v604, %v609
      %v612 = vadd.f32 %v605, %v609
      %v613 = vld [vmem:[%s6] sm:$0xff]
      %v614 = vadd.f32 %v497, %v498
      %615 = vadd.xlane.f32.xlu0 %v614
      %v616 = vpop.xlane.xlu0 %615
      %v617 = vadd.f32 %v613, %v616
      %vm618 = vcmask 7168
      %619 = vst.msk [vmem:[%s6] sm:$0xff] %vm618, %v617
      %v620 = vld [vmem:[%s7] sm:$0xff]
      %v621 = vmul.f32 %v497, %v497
      %v622 = vmul.f32 %v498, %v498
      %v623 = vadd.f32 %v621, %v622
      %624 = vadd.xlane.f32.xlu0 %v623
      %v625 = vpop.xlane.xlu0 %624
      %v626 = vadd.f32 %v620, %v625
      %627 = vst.msk [vmem:[%s7] sm:$0xff] %vm618, %v626
      %v628 = vld [vmem:[%s8] sm:$0xff]
      %v629 = vadd.f32 %v611, %v612
      %630 = vadd.xlane.f32.xlu0 %v629
      %v631 = vpop.xlane.xlu0 %630
      %v632 = vadd.f32 %v628, %v631
      %633 = vst.msk [vmem:[%s8] sm:$0xff] %vm618, %v632
      %v634 = vld [vmem:[%s9] sm:$0xff]
      %v635 = vmul.f32 %v611, %v611
      %v636 = vmul.f32 %v612, %v612
      %v637 = vadd.f32 %v635, %v636
      %638 = vadd.xlane.f32.xlu0 %v637
      %v639 = vpop.xlane.xlu0 %638
      %v640 = vadd.f32 %v634, %v639
      %641 = vst.msk [vmem:[%s9] sm:$0xff] %vm618, %v640
      // Predicated region
      $region49: #{attention_block.3} parent=43 // pred_check
        %p642 = pneg %p186
      $region50: #{attention_block.3} parent=43 // pred_check_branch
        %644 = sbr.rel (%p642) target = $region52
      $region51: #{attention_block.3} parent=43 // pred_region
        _
      $region52: #{attention_block.3} parent=43 // pred_fallthru
        _
      // Predicated region
      $region53: #{attention_block.3} parent=43 // pred_check
        %p645 = pneg %p207
      $region54: #{attention_block.3} parent=43 // pred_check_branch
        %647 = sbr.rel (%p645) target = $region56
      $region55: #{attention_block.3} parent=43 // pred_region
        _
      $region56: #{attention_block.3} parent=43 // pred_fallthru
        _
      // Predicated region
      $region57: #{attention_block.3} parent=43 // pred_check
        %p648 = pneg %p228
      $region58: #{attention_block.3} parent=43 // pred_check_branch
        %650 = sbr.rel (%p648) target = $region60
      $region59: #{attention_block.3} parent=43 // pred_region
        _
      $region60: #{attention_block.3} parent=43 // pred_fallthru
        _
      // Predicated region
      $region61: #{attention_block.3} parent=43 // pred_check
        %p651 = pneg %p249
      $region62: #{attention_block.3} parent=43 // pred_check_branch
        %653 = sbr.rel (%p651) target = $region64
      $region63: #{attention_block.3} parent=43 // pred_region
        _
      $region64: #{attention_block.3} parent=43 // pred_fallthru
        _
      // Predicated region
      $region65: #{attention_block.3} parent=43 // pred_check
        %p654 = pneg %p186
      $region66: #{attention_block.3} parent=43 // pred_check_branch
        %656 = sbr.rel (%p654) target = $region68
      $region67: #{attention_block.3} parent=43 // pred_region
        _
      $region68: #{attention_block.3} parent=43 // pred_fallthru
        _
      // Predicated region
      $region69: #{attention_block.3} parent=43 // pred_check
        %p657 = pneg %p207
      $region70: #{attention_block.3} parent=43 // pred_check_branch
        %659 = sbr.rel (%p657) target = $region72
      $region71: #{attention_block.3} parent=43 // pred_region
        _
      $region72: #{attention_block.3} parent=43 // pred_fallthru
        _
      // Predicated region
      $region73: #{attention_block.3} parent=43 // pred_check
        %p660 = pneg %p228
      $region74: #{attention_block.3} parent=43 // pred_check_branch
        %662 = sbr.rel (%p660) target = $region76
      $region75: #{attention_block.3} parent=43 // pred_region
        _
      $region76: #{attention_block.3} parent=43 // pred_fallthru
        _
      // Predicated region
      $region77: #{attention_block.3} parent=43 // pred_check
        %p663 = pneg %p249
      $region78: #{attention_block.3} parent=43 // pred_check_branch
        %665 = sbr.rel (%p663) target = $region80
      $region79: #{attention_block.3} parent=43 // pred_region
        _
      $region80: #{attention_block.3} parent=43 // pred_fallthru
        _
    $region44: #{attention_block.3} parent=5 // pred_fallthru
      _
    %p666 = scmp.le.s32.totalorder 2, %s16
    // Predicated region
    $region81: #{attention_block.3} parent=5 // pred_check
      %p667 = pneg %p666
    $region82: #{attention_block.3} parent=5 // pred_check_branch
      %669 = sbr.rel (%p667) target = $region84
    $region83: #{attention_block.3} parent=5 // pred_region
      %s670 = ssub.s32 %s16, 2
    $region84: #{attention_block.3} parent=5 // pred_fallthru
      _
  $region6: #{attention_block.3} parent=0 // loop_footer
    %s20 = sadd.s32 1, %s16
  $region7: #{attention_block.3} parent=0 // loop_footer_branch
    %15 = sbr.rel target = $region3
  $region8: #{attention_block.3} parent=0 // loop_exit
    _

// kernel: attention_block.4
$region0: #{attention_block.4}
  #allocation0 [shape = 'u32[]', space=smem, size = 0x4, offset = 0x4, fixed_abs, tag = 'smem constant byte address 0x4 - core index']
  #allocation1 [shape = 'u32[144,128]{1,0:T(1,128)}', space=vmem, size = 0x12000, scoped, tag = 'internal scratch']
  #allocation2 [shape = 'f32[1,1]{1,0:T(1,128)S(1)}', space=vmem, size = 0x200, scoped, tag = 'scoped memory for attention_block.4']
  %s0 = inlined_call_operand.vmem [shape: f32[2,4,256], index: 0, kind: input, shape index: {}]
  %s1 = inlined_call_operand.vmem [shape: f32[2,4,256], index: 1, kind: input, shape index: {}]
  %s2 = inlined_call_operand.vmem [shape: f32[8,4], index: 2, kind: input, shape index: {}]
  %s3 = inlined_call_operand.vmem [shape: f32[8,1], index: 3, kind: input, shape index: {}]
  %s4 = inlined_call_operand.vmem [shape: f32[8,1], index: 4, kind: input, shape index: {}]
  %s5 = inlined_call_operand.vmem [shape: f32[8,4], index: 5, kind: input, shape index: {}]
  %s6 = inlined_call_operand.vmem [shape: f32[8,1], index: 6, kind: input, shape index: {}]
  %s7 = inlined_call_operand.vmem [shape: f32[8,1], index: 7, kind: input, shape index: {}]
  %s8 = inlined_call_operand.vmem [shape: f32[8,1], index: 8, kind: input, shape index: {}]
  %s9 = inlined_call_operand.<no memory space> [shape: f32[1,1], index: 9, kind: input, shape index: {}]
  %s10 = inlined_call_operand.vmem [shape: f32[2,1,256], index: 10, kind: output, shape index: {0}]
  %s11 = inlined_call_operand.hbm [shape: f32[1,1], index: 11, kind: output, shape index: {1}]
  %s12 = inlined_call_operand.hbm [shape: f32[1,1], index: 12, kind: output, shape index: {2}]
  %13 = xla_tuple %s10, %s11, %s12
  %s14 = sld [smem:[#allocation0]]
  $region93: #{attention_block.4} parent=0
    _
  %s16 = ssub.s32 1, %s14
  %s17 = scalar_select 0, %s16, %s14
  %v18 = vstv %s9
  %19 = vst [vmem:[#allocation2] sm:$0x1] %v18
  $region1: #{attention_block.4} parent=0
    #allocation3 [shape = 'u8[512]{0}', space=vmem, size = 0x400, scoped, tag = 'output window, operand 1, single buffered']
    #allocation4 [shape = 's32[2]{0}', space=sflag, size = 0x8, scoped, tag = 'scoped memory for attention_block.4']
    #allocation5 [shape = 'u8[512]{0}', space=vmem, size = 0x400, scoped, tag = 'output window, operand 2, single buffered']
    #allocation6 [shape = 's32[1]{0}', space=sflag, size = 0x4, scoped, tag = 'scoped memory for attention_block.4']
    %20 = vsyncpa [#allocation4], 0
    %21 = vsyncpa [#allocation6], 0
    loop: start=0, step=1, limit=4
    $region2: #{attention_block.4} parent=1 // loop_pre_header
      _
    $region3: #{attention_block.4} parent=1 // loop_header
      %s23 = sphi 0, %s27
      %p24 = scmp.ge.s32.totalorder %s23, 4
      %s30 = sphi 0, %s42
      %s31 = sphi 0, %s38
      %s32 = sphi 0, %s30
      %s33 = sphi 0, %s31
      %s34 = sphi 0, %s32
      %s35 = sphi 0, %s33
      %s47 = sphi 0, %s49
      %s50 = sphi 0, %s47
      %s51 = sphi 0, %s50
      %s67 = sphi 0, %s51
      %s75 = sphi 0, %s77
      %s78 = sphi 0, %s75
      %s79 = sphi 0, %s78
      %s95 = sphi 0, %s79
      %s99 = sphi 0, %s99
      %s101 = sphi 0, %s99
      %s102 = sphi 0, %s101
      %s116 = sphi 0, %s102
      %s120 = sphi 0, %s120
      %s122 = sphi 0, %s120
      %s123 = sphi 0, %s122
      %s137 = sphi 0, %s123
      %s141 = sphi 0, %s141
      %s143 = sphi 0, %s141
      %s144 = sphi 0, %s143
      %s158 = sphi 0, %s144
      %s162 = sphi 0, %s162
      %s164 = sphi 0, %s162
      %s165 = sphi 0, %s164
      %s179 = sphi 0, %s165
      %s183 = sphi 0, %s183
      %s185 = sphi 0, %s183
      %s186 = sphi 0, %s185
      %s200 = sphi 0, %s186
      %s204 = sphi 0, %s204
      %s206 = sphi 0, %s204
      %s207 = sphi 0, %s206
      %s221 = sphi 0, %s207
      %s225 = sphi 0, %s225
      %s227 = sphi 0, %s225
      %s228 = sphi 0, %s227
      %s242 = sphi 0, %s228
      %s246 = sphi 0, %s246
      %s248 = sphi 0, %s246
      %s249 = sphi 0, %s248
      %s263 = sphi 0, %s249
      %s271 = sphi 0, %s273
      %s274 = sphi 0, %s271
      %s275 = sphi 0, %s274
      %s291 = sphi 0, %s275
      %s295 = sphi 0, %s295
      %s297 = sphi 0, %s295
      %s298 = sphi 0, %s297
      %s312 = sphi 0, %s298
      %s316 = sphi 0, %s316
      %s318 = sphi 0, %s316
      %s319 = sphi 0, %s318
      %s333 = sphi 0, %s319
    $region4: #{attention_block.4} parent=1 // loop_header_branch
      %26 = sbr.rel (%p24) target = $region8
    $region5: #{attention_block.4} parent=1 // loop_body
      %s28 = ssub.s32 %s23, 1
      %s29 = ssub.s32 %s23, 2
      %s36 = sadd.s32 1, %s31
      %p37 = scmp.ge.s32.totalorder %s36, 1
      %s38 = scalar_select %p37, 0, %s36
      %s39 = sadd.s32 1, %s30
      %s40 = scalar_select %p37, %s39, %s30
      %p41 = scmp.ge.s32.totalorder %s40, 2
      %s42 = scalar_select %p41, 0, %s40
      %s43 = ssub.s32 %s30, %s42
      %s44 = ssub.s32 %s31, %s38
      %s45 = sor.u32 %s43, %s44
      %p46 = scmp.eq.s32.totalorder %s45, 0
      %s48 = sadd.s32 %s47, 1
      %s49 = scalar_select %p46, %s47, %s48
      %p52 = pneg %p46
      %p53 = scmp.eq.s32.totalorder %s23, 1
      %p54 = por %p52, %p53
      %p55 = scmp.ne.s32.totalorder %s47, %s50
      %p56 = scmp.eq.s32.totalorder %s23, 0
      %p57 = por %p55, %p56
      %p58 = scmp.ne.s32.totalorder %s47, %s50
      %p59 = scmp.eq.s32.totalorder %s28, 1
      %p60 = por %p58, %p59
      %p61 = scmp.ne.s32.totalorder %s50, %s51
      %p62 = scmp.eq.s32.totalorder %s28, 0
      %p63 = por %p61, %p62
      %p64 = scmp.ne.s32.totalorder %s50, %s51
      %p65 = scmp.eq.s32.totalorder %s29, 1
      %p66 = por %p64, %p65
      %p68 = scmp.ne.s32.totalorder %s51, %s67
      %p69 = scmp.eq.s32.totalorder %s29, 0
      %p70 = por %p68, %p69
      %s71 = ssub.s32 %s30, %s42
      %s72 = ssub.s32 %s31, %s38
      %s73 = sor.u32 %s71, %s72
      %p74 = scmp.eq.s32.totalorder %s73, 0
      %s76 = sadd.s32 %s75, 1
      %s77 = scalar_select %p74, %s75, %s76
      %p80 = pneg %p74
      %p81 = scmp.eq.s32.totalorder %s23, 1
      %p82 = por %p80, %p81
      %p83 = scmp.ne.s32.totalorder %s75, %s78
      %p84 = scmp.eq.s32.totalorder %s23, 0
      %p85 = por %p83, %p84
      %p86 = scmp.ne.s32.totalorder %s75, %s78
      %p87 = scmp.eq.s32.totalorder %s28, 1
      %p88 = por %p86, %p87
      %p89 = scmp.ne.s32.totalorder %s78, %s79
      %p90 = scmp.eq.s32.totalorder %s28, 0
      %p91 = por %p89, %p90
      %p92 = scmp.ne.s32.totalorder %s78, %s79
      %p93 = scmp.eq.s32.totalorder %s29, 1
      %p94 = por %p92, %p93
      %p96 = scmp.ne.s32.totalorder %s79, %s95
      %p97 = scmp.eq.s32.totalorder %s29, 0
      %p98 = por %p96, %p97
      %s100 = sadd.s32 %s99, 1
      %p103 = scmp.eq.s32.totalorder %s23, 1
      %p104 = scmp.ne.s32.totalorder %s99, %s101
      %p105 = scmp.eq.s32.totalorder %s23, 0
      %p106 = por %p104, %p105
      %p107 = scmp.ne.s32.totalorder %s99, %s101
      %p108 = scmp.eq.s32.totalorder %s28, 1
      %p109 = por %p107, %p108
      %p110 = scmp.ne.s32.totalorder %s101, %s102
      %p111 = scmp.eq.s32.totalorder %s28, 0
      %p112 = por %p110, %p111
      %p113 = scmp.ne.s32.totalorder %s101, %s102
      %p114 = scmp.eq.s32.totalorder %s29, 1
      %p115 = por %p113, %p114
      %p117 = scmp.ne.s32.totalorder %s102, %s116
      %p118 = scmp.eq.s32.totalorder %s29, 0
      %p119 = por %p117, %p118
      %s121 = sadd.s32 %s120, 1
      %p124 = scmp.eq.s32.totalorder %s23, 1
      %p125 = scmp.ne.s32.totalorder %s120, %s122
      %p126 = scmp.eq.s32.totalorder %s23, 0
      %p127 = por %p125, %p126
      %p128 = scmp.ne.s32.totalorder %s120, %s122
      %p129 = scmp.eq.s32.totalorder %s28, 1
      %p130 = por %p128, %p129
      %p131 = scmp.ne.s32.totalorder %s122, %s123
      %p132 = scmp.eq.s32.totalorder %s28, 0
      %p133 = por %p131, %p132
      %p134 = scmp.ne.s32.totalorder %s122, %s123
      %p135 = scmp.eq.s32.totalorder %s29, 1
      %p136 = por %p134, %p135
      %p138 = scmp.ne.s32.totalorder %s123, %s137
      %p139 = scmp.eq.s32.totalorder %s29, 0
      %p140 = por %p138, %p139
      %s142 = sadd.s32 %s141, 1
      %p145 = scmp.eq.s32.totalorder %s23, 1
      %p146 = scmp.ne.s32.totalorder %s141, %s143
      %p147 = scmp.eq.s32.totalorder %s23, 0
      %p148 = por %p146, %p147
      %p149 = scmp.ne.s32.totalorder %s141, %s143
      %p150 = scmp.eq.s32.totalorder %s28, 1
      %p151 = por %p149, %p150
      %p152 = scmp.ne.s32.totalorder %s143, %s144
      %p153 = scmp.eq.s32.totalorder %s28, 0
      %p154 = por %p152, %p153
      %p155 = scmp.ne.s32.totalorder %s143, %s144
      %p156 = scmp.eq.s32.totalorder %s29, 1
      %p157 = por %p155, %p156
      %p159 = scmp.ne.s32.totalorder %s144, %s158
      %p160 = scmp.eq.s32.totalorder %s29, 0
      %p161 = por %p159, %p160
      %s163 = sadd.s32 %s162, 1
      %p166 = scmp.eq.s32.totalorder %s23, 1
      %p167 = scmp.ne.s32.totalorder %s162, %s164
      %p168 = scmp.eq.s32.totalorder %s23, 0
      %p169 = por %p167, %p168
      %p170 = scmp.ne.s32.totalorder %s162, %s164
      %p171 = scmp.eq.s32.totalorder %s28, 1
      %p172 = por %p170, %p171
      %p173 = scmp.ne.s32.totalorder %s164, %s165
      %p174 = scmp.eq.s32.totalorder %s28, 0
      %p175 = por %p173, %p174
      %p176 = scmp.ne.s32.totalorder %s164, %s165
      %p177 = scmp.eq.s32.totalorder %s29, 1
      %p178 = por %p176, %p177
      %p180 = scmp.ne.s32.totalorder %s165, %s179
      %p181 = scmp.eq.s32.totalorder %s29, 0
      %p182 = por %p180, %p181
      %s184 = sadd.s32 %s183, 1
      %p187 = scmp.eq.s32.totalorder %s23, 1
      %p188 = scmp.ne.s32.totalorder %s183, %s185
      %p189 = scmp.eq.s32.totalorder %s23, 0
      %p190 = por %p188, %p189
      %p191 = scmp.ne.s32.totalorder %s183, %s185
      %p192 = scmp.eq.s32.totalorder %s28, 1
      %p193 = por %p191, %p192
      %p194 = scmp.ne.s32.totalorder %s185, %s186
      %p195 = scmp.eq.s32.totalorder %s28, 0
      %p196 = por %p194, %p195
      %p197 = scmp.ne.s32.totalorder %s185, %s186
      %p198 = scmp.eq.s32.totalorder %s29, 1
      %p199 = por %p197, %p198
      %p201 = scmp.ne.s32.totalorder %s186, %s200
      %p202 = scmp.eq.s32.totalorder %s29, 0
      %p203 = por %p201, %p202
      %s205 = sadd.s32 %s204, 1
      %p208 = scmp.eq.s32.totalorder %s23, 1
      %p209 = scmp.ne.s32.totalorder %s204, %s206
      %p210 = scmp.eq.s32.totalorder %s23, 0
      %p211 = por %p209, %p210
      %p212 = scmp.ne.s32.totalorder %s204, %s206
      %p213 = scmp.eq.s32.totalorder %s28, 1
      %p214 = por %p212, %p213
      %p215 = scmp.ne.s32.totalorder %s206, %s207
      %p216 = scmp.eq.s32.totalorder %s28, 0
      %p217 = por %p215, %p216
      %p218 = scmp.ne.s32.totalorder %s206, %s207
      %p219 = scmp.eq.s32.totalorder %s29, 1
      %p220 = por %p218, %p219
      %p222 = scmp.ne.s32.totalorder %s207, %s221
      %p223 = scmp.eq.s32.totalorder %s29, 0
      %p224 = por %p222, %p223
      %s226 = sadd.s32 %s225, 1
      %p229 = scmp.eq.s32.totalorder %s23, 1
      %p230 = scmp.ne.s32.totalorder %s225, %s227
      %p231 = scmp.eq.s32.totalorder %s23, 0
      %p232 = por %p230, %p231
      %p233 = scmp.ne.s32.totalorder %s225, %s227
      %p234 = scmp.eq.s32.totalorder %s28, 1
      %p235 = por %p233, %p234
      %p236 = scmp.ne.s32.totalorder %s227, %s228
      %p237 = scmp.eq.s32.totalorder %s28, 0
      %p238 = por %p236, %p237
      %p239 = scmp.ne.s32.totalorder %s227, %s228
      %p240 = scmp.eq.s32.totalorder %s29, 1
      %p241 = por %p239, %p240
      %p243 = scmp.ne.s32.totalorder %s228, %s242
      %p244 = scmp.eq.s32.totalorder %s29, 0
      %p245 = por %p243, %p244
      %s247 = sadd.s32 %s246, 1
      %p250 = scmp.eq.s32.totalorder %s23, 1
      %p251 = scmp.ne.s32.totalorder %s246, %s248
      %p252 = scmp.eq.s32.totalorder %s23, 0
      %p253 = por %p251, %p252
      %p254 = scmp.ne.s32.totalorder %s246, %s248
      %p255 = scmp.eq.s32.totalorder %s28, 1
      %p256 = por %p254, %p255
      %p257 = scmp.ne.s32.totalorder %s248, %s249
      %p258 = scmp.eq.s32.totalorder %s28, 0
      %p259 = por %p257, %p258
      %p260 = scmp.ne.s32.totalorder %s248, %s249
      %p261 = scmp.eq.s32.totalorder %s29, 1
      %p262 = por %p260, %p261
      %p264 = scmp.ne.s32.totalorder %s249, %s263
      %p265 = scmp.eq.s32.totalorder %s29, 0
      %p266 = por %p264, %p265
      %s267 = ssub.s32 %s30, %s42
      %s268 = ssub.s32 %s31, %s38
      %s269 = sor.u32 %s267, %s268
      %p270 = scmp.eq.s32.totalorder %s269, 0
      %s272 = sadd.s32 %s271, 1
      %s273 = scalar_select %p270, %s271, %s272
      %p276 = pneg %p270
      %p277 = scmp.eq.s32.totalorder %s23, 1
      %p278 = por %p276, %p277
      %p279 = scmp.ne.s32.totalorder %s271, %s274
      %p280 = scmp.eq.s32.totalorder %s23, 0
      %p281 = por %p279, %p280
      %p282 = scmp.ne.s32.totalorder %s271, %s274
      %p283 = scmp.eq.s32.totalorder %s28, 1
      %p284 = por %p282, %p283
      %p285 = scmp.ne.s32.totalorder %s274, %s275
      %p286 = scmp.eq.s32.totalorder %s28, 0
      %p287 = por %p285, %p286
      %p288 = scmp.ne.s32.totalorder %s274, %s275
      %p289 = scmp.eq.s32.totalorder %s29, 1
      %p290 = por %p288, %p289
      %p292 = scmp.ne.s32.totalorder %s275, %s291
      %p293 = scmp.eq.s32.totalorder %s29, 0
      %p294 = por %p292, %p293
      %s296 = sadd.s32 %s295, 1
      %p299 = scmp.eq.s32.totalorder %s23, 1
      %p300 = scmp.ne.s32.totalorder %s295, %s297
      %p301 = scmp.eq.s32.totalorder %s23, 0
      %p302 = por %p300, %p301
      %p303 = scmp.ne.s32.totalorder %s295, %s297
      %p304 = scmp.eq.s32.totalorder %s28, 1
      %p305 = por %p303, %p304
      %p306 = scmp.ne.s32.totalorder %s297, %s298
      %p307 = scmp.eq.s32.totalorder %s28, 0
      %p308 = por %p306, %p307
      %p309 = scmp.ne.s32.totalorder %s297, %s298
      %p310 = scmp.eq.s32.totalorder %s29, 1
      %p311 = por %p309, %p310
      %p313 = scmp.ne.s32.totalorder %s298, %s312
      %p314 = scmp.eq.s32.totalorder %s29, 0
      %p315 = por %p313, %p314
      %s317 = sadd.s32 %s316, 1
      %p320 = scmp.eq.s32.totalorder %s23, 1
      %p321 = scmp.ne.s32.totalorder %s316, %s318
      %p322 = scmp.eq.s32.totalorder %s23, 0
      %p323 = por %p321, %p322
      %p324 = scmp.ne.s32.totalorder %s316, %s318
      %p325 = scmp.eq.s32.totalorder %s28, 1
      %p326 = por %p324, %p325
      %p327 = scmp.ne.s32.totalorder %s318, %s319
      %p328 = scmp.eq.s32.totalorder %s28, 0
      %p329 = por %p327, %p328
      %p330 = scmp.ne.s32.totalorder %s318, %s319
      %p331 = scmp.eq.s32.totalorder %s29, 1
      %p332 = por %p330, %p331
      %p334 = scmp.ne.s32.totalorder %s319, %s333
      %p335 = scmp.eq.s32.totalorder %s29, 0
      %p336 = por %p334, %p335
      %p337 = scmp.le.s32.totalorder 1, %s23
      %p338 = scmp.lt.s32.totalorder %s23, 3
      %p339 = pnand %p337, %p338
      %p340 = pneg %p339
      // Predicated region
      $region9: #{attention_block.4} parent=5 // pred_check
        _
      $region10: #{attention_block.4} parent=5 // pred_check_branch
        %342 = sbr.rel (%p339) target = $region12
      $region11: #{attention_block.4} parent=5 // pred_region
        %s343 = ssub.s32 %s23, 1
        // Predicated region
        $region13: #{attention_block.4} parent=11 // pred_check
          %p344 = pneg %p112
        $region14: #{attention_block.4} parent=11 // pred_check_branch
          %346 = sbr.rel (%p344) target = $region16
        $region15: #{attention_block.4} parent=11 // pred_region
          _
        $region16: #{attention_block.4} parent=11 // pred_fallthru
          _
        // Predicated region
        $region17: #{attention_block.4} parent=11 // pred_check
          %p347 = pneg %p133
        $region18: #{attention_block.4} parent=11 // pred_check_branch
          %349 = sbr.rel (%p347) target = $region20
        $region19: #{attention_block.4} parent=11 // pred_region
          _
        $region20: #{attention_block.4} parent=11 // pred_fallthru
          _
        // Predicated region
        $region21: #{attention_block.4} parent=11 // pred_check
          %p350 = pneg %p154
        $region22: #{attention_block.4} parent=11 // pred_check_branch
          %352 = sbr.rel (%p350) target = $region24
        $region23: #{attention_block.4} parent=11 // pred_region
          _
        $region24: #{attention_block.4} parent=11 // pred_fallthru
          _
        // Predicated region
        $region25: #{attention_block.4} parent=11 // pred_check
          %p353 = pneg %p175
        $region26: #{attention_block.4} parent=11 // pred_check_branch
          %355 = sbr.rel (%p353) target = $region28
        $region27: #{attention_block.4} parent=11 // pred_region
          _
        $region28: #{attention_block.4} parent=11 // pred_fallthru
          _
        // Predicated region
        $region29: #{attention_block.4} parent=11 // pred_check
          %p356 = pneg %p196
        $region30: #{attention_block.4} parent=11 // pred_check_branch
          %358 = sbr.rel (%p356) target = $region32
        $region31: #{attention_block.4} parent=11 // pred_region
          _
        $region32: #{attention_block.4} parent=11 // pred_fallthru
          _
        // Predicated region
        $region33: #{attention_block.4} parent=11 // pred_check
          %p359 = pneg %p217
        $region34: #{attention_block.4} parent=11 // pred_check_branch
          %361 = sbr.rel (%p359) target = $region36
        $region35: #{attention_block.4} parent=11 // pred_region
          _
        $region36: #{attention_block.4} parent=11 // pred_fallthru
          _
        // Predicated region
        $region37: #{attention_block.4} parent=11 // pred_check
          %p362 = pneg %p238
        $region38: #{attention_block.4} parent=11 // pred_check_branch
          %364 = sbr.rel (%p362) target = $region40
        $region39: #{attention_block.4} parent=11 // pred_region
          _
        $region40: #{attention_block.4} parent=11 // pred_fallthru
          _
        // Predicated region
        $region41: #{attention_block.4} parent=11 // pred_check
          %p365 = pneg %p259
        $region42: #{attention_block.4} parent=11 // pred_check_branch
          %367 = sbr.rel (%p365) target = $region44
        $region43: #{attention_block.4} parent=11 // pred_region
          _
        $region44: #{attention_block.4} parent=11 // pred_fallthru
          _
      $region12: #{attention_block.4} parent=5 // pred_fallthru
        _
      %p368 = scmp.lt.s32.totalorder %s23, 2
      // Predicated region
      $region45: #{attention_block.4} parent=5 // pred_check
        %p369 = pneg %p368
      $region46: #{attention_block.4} parent=5 // pred_check_branch
        %371 = sbr.rel (%p369) target = $region48
      $region47: #{attention_block.4} parent=5 // pred_region
        // Predicated region
        $region49: #{attention_block.4} parent=47 // pred_check
          %p372 = pneg %p57
        $region50: #{attention_block.4} parent=47 // pred_check_branch
          %374 = sbr.rel (%p372) target = $region52
        $region51: #{attention_block.4} parent=47 // pred_region
          %s375 = smul.u32 2, %s31
          %p376 = scmp.lt.s32.totalorder %s30, 1
          %s377 = scalar_select %p376, %s30, 1
          %p378 = scmp.lt.s32.totalorder %s375, 1
          %s379 = scalar_select %p378, %s375, 1
          %s380 = smul.addr %s377, 2
          %s381 = sadd.s32 %s379, %s380
          %s382 = smul.addr %s381, 4
          %s383 = scalar_lea.vmem %s0, %s382
          %s384 = smul.u32 2, %s31
        $region52: #{attention_block.4} parent=47 // pred_fallthru
          _
        // Predicated region
        $region53: #{attention_block.4} parent=47 // pred_check
          %p385 = pneg %p85
        $region54: #{attention_block.4} parent=47 // pred_check_branch
          %387 = sbr.rel (%p385) target = $region56
        $region55: #{attention_block.4} parent=47 // pred_region
          %s388 = smul.u32 2, %s31
          %p389 = scmp.lt.s32.totalorder %s30, 1
          %s390 = scalar_select %p389, %s30, 1
          %p391 = scmp.lt.s32.totalorder %s388, 1
          %s392 = scalar_select %p391, %s388, 1
          %s393 = smul.addr %s390, 2
          %s394 = sadd.s32 %s392, %s393
          %s395 = smul.addr %s394, 4
          %s396 = scalar_lea.vmem %s1, %s395
          %s397 = smul.u32 2, %s31
        $region56: #{attention_block.4} parent=47 // pred_fallthru
          _
      $region48: #{attention_block.4} parent=5 // pred_fallthru
        _
      %p398 = scmp.le.s32.totalorder 1, %s23
      %p399 = scmp.lt.s32.totalorder %s23, 3
      %p400 = pnand %p398, %p399
      %p401 = pneg %p400
      // Predicated region
      $region57: #{attention_block.4} parent=5 // pred_check
        _
      $region58: #{attention_block.4} parent=5 // pred_check_branch
        %403 = sbr.rel (%p400) target = $region60
      $region59: #{attention_block.4} parent=5 // pred_region
        %s404 = ssub.s32 %s23, 1
        %s405 = smul.u32 2, %s33
        %p406 = scmp.lt.s32.totalorder %s32, 1
        %s407 = scalar_select %p406, %s32, 1
        %p408 = scmp.lt.s32.totalorder %s405, 1
        %s409 = scalar_select %p408, %s405, 1
        %s410 = smul.addr %s407, 2
        %s411 = sadd.s32 %s409, %s410
        %s412 = smul.addr %s411, 4
        %s413 = scalar_lea.vmem %s0, %s412
        %p414 = pneg %p63
        %p415 = pneg %p60
        %s416 = smul.u32 2, %s33
        %p417 = scmp.lt.s32.totalorder %s32, 1
        %s418 = scalar_select %p417, %s32, 1
        %p419 = scmp.lt.s32.totalorder %s416, 1
        %s420 = scalar_select %p419, %s416, 1
        %s421 = smul.addr %s418, 2
        %s422 = sadd.s32 %s420, %s421
        %s423 = smul.addr %s422, 4
        %s424 = scalar_lea.vmem %s1, %s423
        %p425 = pneg %p91
        %p426 = pneg %p88
        %p427 = pneg %p112
        %p428 = pneg %p109
        %p429 = pneg %p133
        %p430 = pneg %p130
        %p431 = pneg %p154
        %p432 = pneg %p151
        %p433 = pneg %p175
        %p434 = pneg %p172
        %p435 = pneg %p196
        %p436 = pneg %p193
        %p437 = pneg %p217
        %p438 = pneg %p214
        %p439 = pneg %p238
        %p440 = pneg %p235
        %p441 = pneg %p259
        %p442 = pneg %p256
        %p443 = pneg %p287
        %p444 = pneg %p284
        %s445 = smul.u32 2, %s33
        %p446 = scmp.lt.s32.totalorder %s32, 1
        %s447 = scalar_select %p446, %s32, 1
        %p448 = scmp.lt.s32.totalorder %s445, 1
        %s449 = scalar_select %p448, %s445, 1
        %s450 = smul.addr %s447, 2
        %s451 = sadd.s32 %s449, %s450
        %s452 = scalar_lea.vmem %s10, %s451
        %p453 = pneg %p308
        %p454 = pneg %p305
        %p455 = pneg %p329
        %p456 = pneg %p326
        %s457 = smul.u32 2, %s33
        %p458 = scmp.lt.s32.totalorder %s32, 1
        %s459 = scalar_select %p458, %s32, 1
        %p460 = scmp.lt.s32.totalorder %s457, 1
        %s461 = scalar_select %p460, %s457, 1
        %s462 = smul.addr %s459, 2
        %s463 = sadd.s32 %s461, %s462
        %s464 = smul.addr %s463, 4
        %s465 = scalar_lea.vmem %s0, %s464
        %s466 = smul.u32 2, %s33
        %s467 = smul.u32 2, %s33
        %p468 = scmp.lt.s32.totalorder %s32, 1
        %s469 = scalar_select %p468, %s32, 1
        %p470 = scmp.lt.s32.totalorder %s467, 1
        %s471 = scalar_select %p470, %s467, 1
        %s472 = smul.addr %s469, 2
        %s473 = sadd.s32 %s471, %s472
        %s474 = smul.addr %s473, 4
        %s475 = scalar_lea.vmem %s1, %s474
        %s476 = smul.u32 2, %s33
        %s477 = smul.u32 2, %s33
        %p478 = scmp.lt.s32.totalorder %s32, 1
        %s479 = scalar_select %p478, %s32, 1
        %p480 = scmp.lt.s32.totalorder %s477, 1
        %s481 = scalar_select %p480, %s477, 1
        %s482 = smul.addr %s479, 2
        %s483 = sadd.s32 %s481, %s482
        %s484 = scalar_lea.vmem %s10, %s483
        %s485 = smul.u32 2, %s33
        %p486 = scmp.eq.s32.totalorder %s32, 0
        %p487 = scmp.eq.s32.totalorder %s33, 0
        %p488 = pnand %p486, %p487
        %p489 = pneg %p488
        // Predicated region
        $region61: #{attention_block.4} parent=59 // pred_check
          _
        $region62: #{attention_block.4} parent=59 // pred_check_branch
          %491 = sbr.rel (%p488) target = $region64
        $region63: #{attention_block.4} parent=59 // pred_region
          %vm492 = vcmask 0
          %493 = vst.msk [vmem:[#allocation3] sm:$0x1] %vm492, 0.0
          %494 = vst.msk [vmem:[#allocation5] sm:$0x1] %vm492, 0.0
        $region64: #{attention_block.4} parent=59 // pred_fallthru
          _
        %v495 = vld [vmem:[%s2] sm:$0xff]
        %v496 = vld [vmem:[%s465] sm:$0xff]
        %498 = vset.pattern.permute.xlu0 0
        %499 = vperm.xlu0 %498, %v495
        %v500 = vpop.permute.xlu0 %499
        %v503 = vlaneseq
        %v504 = vshrl.u32 %v503, 7
        %v505 = vsub.s32 0, %v504
        %v506 = vrot.slane %v496, %v505
        %v507 = vlaneseq
        %v508 = vshrl.u32 %v507, 7
        %v509 = vsub.s32 4, %v508
        %v510 = vrot.slane %v496, %v509
        %v513 = vlaneseq
        %v514 = vshrl.u32 %v513, 7
        %v515 = vsub.s32 0, %v514
        %v516 = vrot.slane %v506, %v515
        %v517 = vlaneseq
        %v518 = vshrl.u32 %v517, 7
        %v519 = vsub.s32 0, %v518
        %v520 = vrot.slane %v510, %v519
        %v521 = vmul.f32 %v500, %v516
        %v522 = vmul.f32 %v500, %v520
        %523 = vset.pattern.permute.xlu0 1
        %524 = vperm.xlu0 %523, %v495
        %v525 = vpop.permute.xlu0 %524
        %v527 = vlaneseq
        %v528 = vshrl.u32 %v527, 7
        %v529 = vsub.s32 1, %v528
        %v530 = vrot.slane %v496, %v529
        %v531 = vlaneseq
        %v532 = vshrl.u32 %v531, 7
        %v533 = vsub.s32 5, %v532
        %v534 = vrot.slane %v496, %v533
        %v537 = vlaneseq
        %v538 = vshrl.u32 %v537, 7
        %v539 = vsub.s32 1, %v538
        %v540 = vrot.slane %v530, %v539
        %v541 = vlaneseq
        %v542 = vshrl.u32 %v541, 7
        %v543 = vsub.s32 1, %v542
        %v544 = vrot.slane %v534, %v543
        %v545 = vmul.f32 %v525, %v540
        %v546 = vmul.f32 %v525, %v544
        %v547 = vadd.f32 %v521, %v545
        %v548 = vadd.f32 %v522, %v546
        %549 = vset.pattern.permute.xlu0 2
        %550 = vperm.xlu0 %549, %v495
        %v551 = vpop.permute.xlu0 %550
        %v553 = vlaneseq
        %v554 = vshrl.u32 %v553, 7
        %v555 = vsub.s32 2, %v554
        %v556 = vrot.slane %v496, %v555
        %v557 = vlaneseq
        %v558 = vshrl.u32 %v557, 7
        %v559 = vsub.s32 6, %v558
        %v560 = vrot.slane %v496, %v559
        %v563 = vlaneseq
        %v564 = vshrl.u32 %v563, 7
        %v565 = vsub.s32 2, %v564
        %v566 = vrot.slane %v556, %v565
        %v567 = vlaneseq
        %v568 = vshrl.u32 %v567, 7
        %v569 = vsub.s32 2, %v568
        %v570 = vrot.slane %v560, %v569
        %v571 = vmul.f32 %v551, %v566
        %v572 = vmul.f32 %v551, %v570
        %v573 = vadd.f32 %v547, %v571
        %v574 = vadd.f32 %v548, %v572
        %575 = vset.pattern.permute.xlu0 3
        %576 = vperm.xlu0 %575, %v495
        %v577 = vpop.permute.xlu0 %576
        %v579 = vlaneseq
        %v580 = vshrl.u32 %v579, 7
        %v581 = vsub.s32 3, %v580
        %v582 = vrot.slane %v496, %v581
        %v583 = vlaneseq
        %v584 = vshrl.u32 %v583, 7
        %v585 = vsub.s32 7, %v584
        %v586 = vrot.slane %v496, %v585
        %v589 = vlaneseq
        %v590 = vshrl.u32 %v589, 7
        %v591 = vsub.s32 3, %v590
        %v592 = vrot.slane %v582, %v591
        %v593 = vlaneseq
        %v594 = vshrl.u32 %v593, 7
        %v595 = vsub.s32 3, %v594
        %v596 = vrot.slane %v586, %v595
        %v597 = vmul.f32 %v577, %v592
        %v598 = vmul.f32 %v577, %v596
        %v599 = vadd.f32 %v573, %v597
        %v600 = vadd.f32 %v574, %v598
        %v601 = vld [vmem:[%s3] sm:$0xff]
        %603 = vset.pattern.permute.xlu0 0
        %604 = vperm.xlu0 %603, %v601
        %v605 = vpop.permute.xlu0 %604
        %v607 = vmul.f32 %v599, %v605
        %v608 = vmul.f32 %v600, %v605
        %v609 = vld [vmem:[%s4] sm:$0xff]
        %611 = vset.pattern.permute.xlu0 0
        %612 = vperm.xlu0 %611, %v609
        %v613 = vpop.permute.xlu0 %612
        %v615 = vadd.f32 %v607, %v613
        %v616 = vadd.f32 %v608, %v613
        %v617 = vld [vmem:[%s5] sm:$0xff]
        %v618 = vld [vmem:[%s475] sm:$0xff]
        %620 = vset.pattern.permute.xlu0 0
        %621 = vperm.xlu0 %620, %v617
        %v622 = vpop.permute.xlu0 %621
        %v625 = vlaneseq
        %v626 = vshrl.u32 %v625, 7
        %v627 = vsub.s32 0, %v626
        %v628 = vrot.slane %v618, %v627
        %v629 = vlaneseq
        %v630 = vshrl.u32 %v629, 7
        %v631 = vsub.s32 4, %v630
        %v632 = vrot.slane %v618, %v631
        %v635 = vlaneseq
        %v636 = vshrl.u32 %v635, 7
        %v637 = vsub.s32 0, %v636
        %v638 = vrot.slane %v628, %v637
        %v639 = vlaneseq
        %v640 = vshrl.u32 %v639, 7
        %v641 = vsub.s32 0, %v640
        %v642 = vrot.slane %v632, %v641
        %v643 = vmul.f32 %v622, %v638
        %v644 = vmul.f32 %v622, %v642
        %645 = vset.pattern.permute.xlu0 1
        %646 = vperm.xlu0 %645, %v617
        %v647 = vpop.permute.xlu0 %646
        %v649 = vlaneseq
        %v650 = vshrl.u32 %v649, 7
        %v651 = vsub.s32 1, %v650
        %v652 = vrot.slane %v618, %v651
        %v653 = vlaneseq
        %v654 = vshrl.u32 %v653, 7
        %v655 = vsub.s32 5, %v654
        %v656 = vrot.slane %v618, %v655
        %v659 = vlaneseq
        %v660 = vshrl.u32 %v659, 7
        %v661 = vsub.s32 1, %v660
        %v662 = vrot.slane %v652, %v661
        %v663 = vlaneseq
        %v664 = vshrl.u32 %v663, 7
        %v665 = vsub.s32 1, %v664
        %v666 = vrot.slane %v656, %v665
        %v667 = vmul.f32 %v647, %v662
        %v668 = vmul.f32 %v647, %v666
        %v669 = vadd.f32 %v643, %v667
        %v670 = vadd.f32 %v644, %v668
        %671 = vset.pattern.permute.xlu0 2
        %672 = vperm.xlu0 %671, %v617
        %v673 = vpop.permute.xlu0 %672
        %v675 = vlaneseq
        %v676 = vshrl.u32 %v675, 7
        %v677 = vsub.s32 2, %v676
        %v678 = vrot.slane %v618, %v677
        %v679 = vlaneseq
        %v680 = vshrl.u32 %v679, 7
        %v681 = vsub.s32 6, %v680
        %v682 = vrot.slane %v618, %v681
        %v685 = vlaneseq
        %v686 = vshrl.u32 %v685, 7
        %v687 = vsub.s32 2, %v686
        %v688 = vrot.slane %v678, %v687
        %v689 = vlaneseq
        %v690 = vshrl.u32 %v689, 7
        %v691 = vsub.s32 2, %v690
        %v692 = vrot.slane %v682, %v691
        %v693 = vmul.f32 %v673, %v688
        %v694 = vmul.f32 %v673, %v692
        %v695 = vadd.f32 %v669, %v693
        %v696 = vadd.f32 %v670, %v694
        %697 = vset.pattern.permute.xlu0 3
        %698 = vperm.xlu0 %697, %v617
        %v699 = vpop.permute.xlu0 %698
        %v701 = vlaneseq
        %v702 = vshrl.u32 %v701, 7
        %v703 = vsub.s32 3, %v702
        %v704 = vrot.slane %v618, %v703
        %v705 = vlaneseq
        %v706 = vshrl.u32 %v705, 7
        %v707 = vsub.s32 7, %v706
        %v708 = vrot.slane %v618, %v707
        %v711 = vlaneseq
        %v712 = vshrl.u32 %v711, 7
        %v713 = vsub.s32 3, %v712
        %v714 = vrot.slane %v704, %v713
        %v715 = vlaneseq
        %v716 = vshrl.u32 %v715, 7
        %v717 = vsub.s32 3, %v716
        %v718 = vrot.slane %v708, %v717
        %v719 = vmul.f32 %v699, %v714
        %v720 = vmul.f32 %v699, %v718
        %v721 = vadd.f32 %v695, %v719
        %v722 = vadd.f32 %v696, %v720
        %v723 = vld [vmem:[%s6] sm:$0xff]
        %725 = vset.pattern.permute.xlu0 0
        %726 = vperm.xlu0 %725, %v723
        %v727 = vpop.permute.xlu0 %726
        %v729 = vmul.f32 %v721, %v727
        %v730 = vmul.f32 %v722, %v727
        %v731 = vld [vmem:[%s7] sm:$0xff]
        %733 = vset.pattern.permute.xlu0 0
        %734 = vperm.xlu0 %733, %v731
        %v735 = vpop.permute.xlu0 %734
        %v737 = vadd.f32 %v729, %v735
        %v738 = vadd.f32 %v730, %v735
        %v739 = vadd.f32 %v615, %v737
        %v740 = vadd.f32 %v616, %v738
        %v741 = vmax.f32 %v739, 0.0
        %v742 = vmax.f32 %v740, 0.0
        %v743 = vld [vmem:[%s8] sm:$0xff]
        %745 = vset.pattern.permute.xlu0 0
        %746 = vperm.xlu0 %745, %v743
        %v747 = vpop.permute.xlu0 %746
        %v749 = vmul.f32 %v741, %v747
        %v750 = vmul.f32 %v742, %v747
        %v751 = vrot.slane %v749, 4
        %v752 = vadd.f32 %v749, %v751
        %v753 = vrot.slane %v752, 2
        %v754 = vadd.f32 %v752, %v753
        %v755 = vrot.slane %v754, 1
        %v756 = vadd.f32 %v754, %v755
        %v757 = vrot.slane %v750, 4
        %v758 = vadd.f32 %v750, %v757
        %v759 = vrot.slane %v758, 2
        %v760 = vadd.f32 %v758, %v759
        %v761 = vrot.slane %v760, 1
        %v762 = vadd.f32 %v760, %v761
        %v763 = vld [vmem:[#allocation2] sm:$0x1]
        %765 = vset.pattern.permute.xlu0 0
        %766 = vperm.xlu0 %765, %v763
        %v767 = vpop.permute.xlu0 %766
        %v769 = vlaneseq
        %v770 = vshrl.u32 %v769, 7
        %v771 = vsub.s32 0, %v770
        %v772 = vrot.slane %v767, %v771
        %v773 = vadd.f32 %v756, %v772
        %v774 = vadd.f32 %v762, %v772
        %v777 = vcombine.low %v773, %v774
        %v779 = vunpack.c.l.s4 1966171168
        %v780 = vunpack.c.0.s8 %v779
        %v781 = vlaneseq
        %v782 = vshrl.u32 %v781, 7
        %v783 = vsub.s32 %v780, %v782
        %v784 = vrot.slane %v777, %v783
        %v786 = vunpack.c.l.s4 1966171168
        %v787 = vunpack.c.0.s8 %v786
        %v788 = vlaneseq
        %v789 = vshrl.u32 %v788, 7
        %v790 = vsub.s32 %v787, %v789
        %v791 = vrot.slane %v784, %v790
        %v793 = vlaneseq
        %vm794 = vcmp.ge.s32.totalorder %v793, 0
        %vm795 = vcmp.lt.s32.totalorder %v793, 256
        %vm796 = vmand %vm794, %vm795
        %797 = vst.msk [vmem:[%s484] sm:$0x3] %vm796, %v791
        %v798 = vld [vmem:[#allocation3] sm:$0x1]
        %v799 = vadd.f32 %v773, %v774
        %800 = vadd.xlane.f32.xlu0 %v799
        %v801 = vpop.xlane.xlu0 %800
        %v802 = vadd.f32 %v798, %v801
        %vm803 = vcmask 0
        %804 = vst.msk [vmem:[#allocation3] sm:$0x1] %vm803, %v802
        %v805 = vld [vmem:[#allocation5] sm:$0x1]
        %v806 = vmul.f32 %v773, %v773
        %v807 = vmul.f32 %v774, %v774
        %v808 = vadd.f32 %v806, %v807
        %809 = vadd.xlane.f32.xlu0 %v808
        %v810 = vpop.xlane.xlu0 %809
        %v811 = vadd.f32 %v805, %v810
        %812 = vst.msk [vmem:[#allocation5] sm:$0x1] %vm803, %v811
        %s813 = smul.u32 2, %s33
        %p814 = scmp.lt.s32.totalorder %s32, 1
        %s815 = scalar_select %p814, %s32, 1
        %p816 = scmp.lt.s32.totalorder %s813, 1
        %s817 = scalar_select %p816, %s813, 1
        %s818 = smul.addr %s815, 2
        %s819 = sadd.s32 %s817, %s818
        %s820 = scalar_lea.vmem %s10, %s819
        // Predicated region
        $region65: #{attention_block.4} parent=59 // pred_check
          %p821 = pneg %p284
        $region66: #{attention_block.4} parent=59 // pred_check_branch
          %823 = sbr.rel (%p821) target = $region68
        $region67: #{attention_block.4} parent=59 // pred_region
          %s824 = smul.u32 2, %s33
        $region68: #{attention_block.4} parent=59 // pred_fallthru
          _
        // Predicated region
        $region69: #{attention_block.4} parent=59 // pred_check
          %p825 = pneg %p305
        $region70: #{attention_block.4} parent=59 // pred_check_branch
          %827 = sbr.rel (%p825) target = $region72
        $region71: #{attention_block.4} parent=59 // pred_region
          %s829 = ssub.s32 16, 16
          %830 = vsyncadd [#allocation4], %s829
          %s832 = sshll.u32 [#allocation3], 4
          %s833 = int_to_ptr.vmem [resolvable:$true] %s832
          %835 = dma.vmem_to_hbm [thread:$0]  %s833, 16, %s11, [#allocation4]
        $region72: #{attention_block.4} parent=59 // pred_fallthru
          _
        // Predicated region
        $region73: #{attention_block.4} parent=59 // pred_check
          %p836 = pneg %p326
        $region74: #{attention_block.4} parent=59 // pred_check_branch
          %838 = sbr.rel (%p836) target = $region76
        $region75: #{attention_block.4} parent=59 // pred_region
          %s840 = ssub.s32 16, 16
          %841 = vsyncadd [#allocation6], %s840
          %s843 = sshll.u32 [#allocation5], 4
          %s844 = int_to_ptr.vmem [resolvable:$true] %s843
          %846 = dma.vmem_to_hbm [thread:$0]  %s844, 16, %s12, [#allocation6]
        $region76: #{attention_block.4} parent=59 // pred_fallthru
          _
        // Predicated region
        $region77: #{attention_block.4} parent=59 // pred_check
          %p847 = pneg %p305
        $region78: #{attention_block.4} parent=59 // pred_check_branch
          %849 = sbr.rel (%p847) target = $region80
        $region79: #{attention_block.4} parent=59 // pred_region
          %850 = dma.done [#allocation4], 16
        $region80: #{attention_block.4} parent=59 // pred_fallthru
          _
        // Predicated region
        $region81: #{attention_block.4} parent=59 // pred_check
          %p851 = pneg %p326
        $region82: #{attention_block.4} parent=59 // pred_check_branch
          %853 = sbr.rel (%p851) target = $region84
        $region83: #{attention_block.4} parent=59 // pred_region
          %854 = dma.done [#allocation6], 16
        $region84: #{attention_block.4} parent=59 // pred_fallthru
          _
      $region60: #{attention_block.4} parent=5 // pred_fallthru
        _
      %p855 = scmp.le.s32.totalorder 2, %s23
      // Predicated region
      $region85: #{attention_block.4} parent=5 // pred_check
        %p856 = pneg %p855
      $region86: #{attention_block.4} parent=5 // pred_check_branch
        %858 = sbr.rel (%p856) target = $region88
      $region87: #{attention_block.4} parent=5 // pred_region
        %s859 = ssub.s32 %s23, 2
        // Predicated region
        $region89: #{attention_block.4} parent=87 // pred_check
          %p860 = pneg %p290
        $region90: #{attention_block.4} parent=87 // pred_check_branch
          %862 = sbr.rel (%p860) target = $region92
        $region91: #{attention_block.4} parent=87 // pred_region
          %s863 = smul.u32 2, %s35
          %p864 = scmp.lt.s32.totalorder %s34, 1
          %s865 = scalar_select %p864, %s34, 1
          %p866 = scmp.lt.s32.totalorder %s863, 1
          %s867 = scalar_select %p866, %s863, 1
          %s868 = smul.addr %s865, 2
          %s869 = sadd.s32 %s867, %s868
          %s870 = scalar_lea.vmem %s10, %s869
        $region92: #{attention_block.4} parent=87 // pred_fallthru
          _
      $region88: #{attention_block.4} parent=5 // pred_fallthru
        _
    $region6: #{attention_block.4} parent=1 // loop_footer
      %s27 = sadd.s32 1, %s23
    $region7: #{attention_block.4} parent=1 // loop_footer_branch
      %22 = sbr.rel target = $region3
    $region8: #{attention_block.4} parent=1 // loop_exit
      _
    %871 = vsyncpa [#allocation4], 1
    %s872 = scalar_lea.sflag [#allocation4], 1
    %873 = vsyncpa %s872, 1
    %874 = vsyncpa [#allocation6], 1

</llo_original>
